<compile_context>
chip_gen: v7x
topology: tpu7x:2x2x1
jax: 0.10.0
libtpu: 0.0.40
codegen_flags: <defaults>
</compile_context>

<pallas_src>
import functools

import jax
import jax.numpy as jnp
from jax.experimental import pallas as pl
from jax.experimental.pallas import tpu as pltpu

EPS = 1e-5

# Smallest per-core physical VMEM across targeted generations is v7x (64 MiB);
# keep a safety margin for Mosaic-internal scratch.
_VMEM_CAP_BYTES = 48 * 1024 * 1024


# --------------------------------------------------------------------------
# Fused single-kernel path (whole batch resident in VMEM).
# --------------------------------------------------------------------------
def _fused_kernel(x_ref, w1_ref, g1_ref, be1_ref, w2_ref, g2_ref, be2_ref,
                  w3_ref, g3_ref, be3_ref, w4_ref, b4_ref, out_ref,
                  *, matmul_dtype):
    def bn_relu(h, g_ref, be_ref):
        # Training-mode BatchNorm1d: per-batch stats, biased variance.
        mu = jnp.mean(h, axis=0, keepdims=True)
        hc = h - mu
        var = jnp.mean(hc * hc, axis=0, keepdims=True)
        scale = g_ref[...] * jax.lax.rsqrt(var + EPS)
        return jnp.maximum(hc * scale + be_ref[...], 0.0)

    h = jnp.dot(x_ref[...].astype(matmul_dtype), w1_ref[...],
                preferred_element_type=jnp.float32)
    h = bn_relu(h, g1_ref, be1_ref)
    h = jnp.dot(h.astype(matmul_dtype), w2_ref[...],
                preferred_element_type=jnp.float32)
    h = bn_relu(h, g2_ref, be2_ref)
    h = jnp.dot(h.astype(matmul_dtype), w3_ref[...],
                preferred_element_type=jnp.float32)
    h = bn_relu(h, g3_ref, be3_ref)
    h = jnp.dot(h.astype(matmul_dtype), w4_ref[...],
                preferred_element_type=jnp.float32) + b4_ref[...]
    # Output lane dim is padded to a multiple of 128 -> unmasked dense stores.
    out_ref[...] = jnp.tanh(h).astype(out_ref.dtype)


def _forward_fused(x, p, out_pad, out_dtype, vmem_needed):
    B, d_in = x.shape
    matmul_dtype = p["w1"].dtype
    flat = (x, p["w1"], p["g1"], p["be1"], p["w2"], p["g2"], p["be2"],
            p["w3"], p["g3"], p["be3"], p["w4"], p["b4"])

    flops = 2 * B * (d_in * 128 + 128 * 256 + 256 * 512 + 512 * out_pad)
    transcendentals = (128 + 256 + 512) + B * out_pad          # rsqrt + tanh
    bytes_accessed = (sum(int(a.size) * a.dtype.itemsize for a in flat)
                      + B * out_pad * jnp.dtype(out_dtype).itemsize)

    vmem_spec = pl.BlockSpec(memory_space=pltpu.MemorySpace.VMEM)
    return pl.pallas_call(
        functools.partial(_fused_kernel, matmul_dtype=matmul_dtype),
        out_shape=jax.ShapeDtypeStruct((B, out_pad), out_dtype),
        in_specs=[vmem_spec] * len(flat),
        out_specs=vmem_spec,
        cost_estimate=pl.CostEstimate(flops=flops,
                                      transcendentals=transcendentals,
                                      bytes_accessed=bytes_accessed),
        compiler_params=pltpu.CompilerParams(
            vmem_limit_bytes=int(min(max(vmem_needed, 16 << 20),
                                     _VMEM_CAP_BYTES))),
    )(*flat)


# --------------------------------------------------------------------------
# Batch-tiled path (four grid-pipelined calls; BN stats accumulated per call).
# --------------------------------------------------------------------------
def _lin_stats_kernel(x_ref, w_ref, h_ref, sum_ref, sq_ref, *, matmul_dtype):
    # h = x @ W (no bias: cancels under BN); accumulate per-feature sum/sumsq.
    @pl.when(pl.program_id(0) == 0)
    def _():
        sum_ref[...] = jnp.zeros_like(sum_ref)
        sq_ref[...] = jnp.zeros_like(sq_ref)

    h = jnp.dot(x_ref[...].astype(matmul_dtype), w_ref[...],
                preferred_element_type=jnp.float32)
    h_ref[...] = h
    sum_ref[...] += jnp.sum(h, axis=0, keepdims=True)
    sq_ref[...] += jnp.sum(h * h, axis=0, keepdims=True)


def _bn_relu_lin_stats_kernel(hp_ref, sum_p_ref, sq_p_ref, g_ref, be_ref,
                              w_ref, h_ref, sum_ref, sq_ref,
                              *, n, m_tile, matmul_dtype):
    i = pl.program_id(0)

    @pl.when(i == 0)
    def _():
        sum_ref[...] = jnp.zeros_like(sum_ref)
        sq_ref[...] = jnp.zeros_like(sq_ref)

    inv_n = 1.0 / n
    mu = sum_p_ref[...] * inv_n
    var = sq_p_ref[...] * inv_n - mu * mu
    scale = g_ref[...] * jax.lax.rsqrt(var + EPS)
    shift = be_ref[...] - mu * scale
    a = jnp.maximum(hp_ref[...] * scale + shift, 0.0)
    # Zero padded batch rows so they contribute nothing to the next stats.
    row = jax.lax.broadcasted_iota(jnp.int32, a.shape, 0) + i * m_tile
    a = jnp.where(row < n, a, 0.0)

    h = jnp.dot(a.astype(matmul_dtype), w_ref[...],
                preferred_element_type=jnp.float32)
    h_ref[...] = h
    sum_ref[...] += jnp.sum(h, axis=0, keepdims=True)
    sq_ref[...] += jnp.sum(h * h, axis=0, keepdims=True)


def _bn_relu_lin_tanh_kernel(hp_ref, sum_p_ref, sq_p_ref, g_ref, be_ref,
                             w_ref, b_ref, out_ref, *, n, matmul_dtype):
    inv_n = 1.0 / n
    mu = sum_p_ref[...] * inv_n
    var = sq_p_ref[...] * inv_n - mu * mu
    scale = g_ref[...] * jax.lax.rsqrt(var + EPS)
    shift = be_ref[...] - mu * scale
    a = jnp.maximum(hp_ref[...] * scale + shift, 0.0)
    h = jnp.dot(a.astype(matmul_dtype), w_ref[...],
                preferred_element_type=jnp.float32) + b_ref[...]
    out_ref[...] = jnp.tanh(h).astype(out_ref.dtype)   # padded rows sliced off


def _tile_vmem_limit(m_tile, k, n_out, mm_isz, out_isz=4):
    weights = k * n_out * mm_isz
    vectors = 8 * n_out * 4                           # stats / affine / bias
    tiles = 2 * m_tile * (k * (4 + mm_isz) + n_out * out_isz)  # double-buffer
    return int(min(max(2 * (weights + vectors + tiles) + (2 << 20), 16 << 20),
                   _VMEM_CAP_BYTES))


def _forward_tiled(x, p, out_pad, out_dtype, m_tile):
    B, d_in = x.shape
    matmul_dtype = p["w1"].dtype
    mm_isz = jnp.dtype(matmul_dtype).itemsize
    out_isz = jnp.dtype(out_dtype).itemsize

    # M tile: 256 matches the v6e/v7x MXU height (use 128 on v5e).  Clamp so a
    # tiny batch is not over-padded; keep a multiple of 8 (f32 sublane tile).
    m_tile = max(8, min(m_tile, pl.cdiv(B, 8) * 8))
    m_tile -= m_tile % 8
    B_pad = pl.cdiv(B, m_tile) * m_tile
    if B_pad != B:
        x = jnp.pad(x, ((0, B_pad - B), (0, 0)))
    T = B_pad // m_tile

    # ---- layer 1: h1 = x @ W1, accumulate per-feature sum / sum-of-squares.
    h1, s1, q1 = pl.pallas_call(
        functools.partial(_lin_stats_kernel, matmul_dtype=matmul_dtype),
        grid=(T,),
        in_specs=[pl.BlockSpec((m_tile, d_in), lambda i: (i, 0)),
                  pl.BlockSpec((d_in, 128), lambda i: (0, 0))],
        out_specs=(pl.BlockSpec((m_tile, 128), lambda i: (i, 0)),
                   pl.BlockSpec((1, 128), lambda i: (0, 0)),
                   pl.BlockSpec((1, 128), lambda i: (0, 0))),
        out_shape=(jax.ShapeDtypeStruct((B_pad, 128), jnp.float32),
                   jax.ShapeDtypeStruct((1, 128), jnp.float32),
                   jax.ShapeDtypeStruct((1, 128), jnp.float32)),
        compiler_params=pltpu.CompilerParams(
            dimension_semantics=("arbitrary",),
            vmem_limit_bytes=_tile_vmem_limit(m_tile, d_in, 128, mm_isz)),
    )(x, p["w1"])

    def bn_lin_stats(h_prev, s_prev, q_prev, g, be, w):
        k = h_prev.shape[1]
        n_out = w.shape[1]
        return pl.pallas_call(
            functools.partial(_bn_relu_lin_stats_kernel, n=B, m_tile=m_tile,
                              matmul_dtype=matmul_dtype),
            grid=(T,),
            in_specs=[pl.BlockSpec((m_tile, k), lambda i: (i, 0)),
                      pl.BlockSpec((1, k), lambda i: (0, 0)),
                      pl.BlockSpec((1, k), lambda i: (0, 0)),
                      pl.BlockSpec((1, k), lambda i: (0, 0)),
                      pl.BlockSpec((1, k), lambda i: (0, 0)),
                      pl.BlockSpec((k, n_out), lambda i: (0, 0))],
            out_specs=(pl.BlockSpec((m_tile, n_out), lambda i: (i, 0)),
                       pl.BlockSpec((1, n_out), lambda i: (0, 0)),
                       pl.BlockSpec((1, n_out), lambda i: (0, 0))),
            out_shape=(jax.ShapeDtypeStruct((B_pad, n_out), jnp.float32),
                       jax.ShapeDtypeStruct((1, n_out), jnp.float32),
                       jax.ShapeDtypeStruct((1, n_out), jnp.float32)),
            compiler_params=pltpu.CompilerParams(
                dimension_semantics=("arbitrary",),
                vmem_limit_bytes=_tile_vmem_limit(m_tile, k, n_out, mm_isz)),
        )(h_prev, s_prev, q_prev, g, be, w)

    h2, s2, q2 = bn_lin_stats(h1, s1, q1, p["g1"], p["be1"], p["w2"])
    h3, s3, q3 = bn_lin_stats(h2, s2, q2, p["g2"], p["be2"], p["w3"])

    # ---- layer 4: bn3 + relu + fc4 + bias + tanh.
    out = pl.pallas_call(
        functools.partial(_bn_relu_lin_tanh_kernel, n=B,
                          matmul_dtype=matmul_dtype),
        grid=(T,),
        in_specs=[pl.BlockSpec((m_tile, 512), lambda i: (i, 0)),
                  pl.BlockSpec((1, 512), lambda i: (0, 0)),
                  pl.BlockSpec((1, 512), lambda i: (0, 0)),
                  pl.BlockSpec((1, 512), lambda i: (0, 0)),
                  pl.BlockSpec((1, 512), lambda i: (0, 0)),
                  pl.BlockSpec((512, out_pad), lambda i: (0, 0)),
                  pl.BlockSpec((1, out_pad), lambda i: (0, 0))],
        out_specs=pl.BlockSpec((m_tile, out_pad), lambda i: (i, 0)),
        out_shape=jax.ShapeDtypeStruct((B_pad, out_pad), out_dtype),
        compiler_params=pltpu.CompilerParams(
            dimension_semantics=("parallel",),
            vmem_limit_bytes=_tile_vmem_limit(m_tile, 512, out_pad, mm_isz,
                                              out_isz)),
    )(h3, s3, q3, p["g3"], p["be3"], p["w4"], p["b4"])
    return out


# --------------------------------------------------------------------------
# Wrapper / parameter prep
# --------------------------------------------------------------------------
def prepare_params(params, sequence_length, matmul_dtype=jnp.bfloat16):
    """One-time weight prep (do this OUTSIDE the per-step jit): cast weights to
    the matmul dtype and pad w4/b4 to a lane-dense (multiple-of-128) width.
    fc1..fc3 biases are dropped: training-mode BatchNorm cancels them exactly."""
    out_dim = sequence_length * 4
    out_pad = pl.cdiv(out_dim, 128) * 128
    w4 = params["w4"]
    b4 = params["b4"]
    if out_pad != out_dim:
        w4 = jnp.pad(w4, ((0, 0), (0, out_pad - out_dim)))
        b4 = jnp.pad(b4, ((0, 0), (0, out_pad - out_dim)))
    return {
        "w1": params["w1"].astype(matmul_dtype),
        "w2": params["w2"].astype(matmul_dtype),
        "w3": params["w3"].astype(matmul_dtype),
        "w4": w4.astype(matmul_dtype),
        "b4": b4.astype(jnp.float32),
        "g1": params["g1"], "be1": params["be1"],
        "g2": params["g2"], "be2": params["be2"],
        "g3": params["g3"], "be3": params["be3"],
    }


def generator_forward(noise, expression, prepared, sequence_length, *,
                      out_dtype=jnp.float32, m_tile=256, force_tiled=False):
    """Forward pass.  Chooses a fully fused kernel when the whole batch fits in
    VMEM, otherwise a batch-tiled 4-call pipeline (no VMEM ceiling on B)."""
    B = noise.shape[0]
    out_dim = sequence_length * 4
    out_pad = prepared["w4"].shape[1]
    assert out_pad >= out_dim
    matmul_dtype = prepared["w1"].dtype
    mm_isz = jnp.dtype(matmul_dtype).itemsize

    x = jnp.concatenate([noise, expression], axis=1).astype(jnp.float32)
    d_in = x.shape[1]
    assert prepared["w1"].shape[0] == d_in

    # Resident-footprint estimate for the fused path (weights + activations +
    # matmul-dtype casts + output), x2 slack for compiler temporaries.
    param_bytes = sum(int(prepared[k].size) * prepared[k].dtype.itemsize
                      for k in prepared)
    act_bytes = (4 * B * (d_in + 128 + 256 + 512 + out_pad)
                 + mm_isz * B * (d_in + 128 + 256 + 512)
                 + jnp.dtype(out_dtype).itemsize * B * out_pad)
    fused_needed = 2 * (param_bytes + act_bytes) + (4 << 20)

    if not force_tiled and fused_needed <= _VMEM_CAP_BYTES:
        out = _forward_fused(x, prepared, out_pad, out_dtype, fused_needed)
    else:
        out = _forward_tiled(x, prepared, out_pad, out_dtype, m_tile)

    return out[:B, :out_dim].reshape(B, sequence_length, 4)


# --------------------------------------------------------------------------
# Params / reference
# --------------------------------------------------------------------------
def init_params(key, latent_dim, expression_dim, sequence_length):
    """Deterministic parameter init mimicking PyTorch default Linear init."""
    dims = [latent_dim + expression_dim, 128, 256, 512, sequence_length * 4]
    params = {}
    keys = jax.random.split(key, 8)
    for i in range(4):
        fan_in = dims[i]
        bound = 1.0 / jnp.sqrt(fan_in)
        # Stored as (in, out) so the kernel does x @ W directly.
        params[f"w{i + 1}"] = jax.random.uniform(
            keys[2 * i], (dims[i], dims[i + 1]),
            minval=-bound, maxval=bound, dtype=jnp.float32)
        params[f"b{i + 1}"] = jax.random.uniform(
            keys[2 * i + 1], (1, dims[i + 1]),
            minval=-bound, maxval=bound, dtype=jnp.float32)
    for i, h in enumerate([128, 256, 512], start=1):
        params[f"g{i}"] = jnp.ones((1, h), jnp.float32)
        params[f"be{i}"] = jnp.zeros((1, h), jnp.float32)
    return params


def reference_forward(noise, expression, params, sequence_length,
                      matmul_dtype=jnp.float32):
    """Pure-JAX reference with identical semantics (biases included)."""
    x = jnp.concatenate([noise, expression], axis=1)

    def lin_bn_relu(h, w, b, g, be):
        h = jnp.dot(h.astype(matmul_dtype), w.astype(matmul_dtype),
                    preferred_element_type=jnp.float32) + b
        mu = jnp.mean(h, axis=0, keepdims=True)
        var = jnp.mean((h - mu) ** 2, axis=0, keepdims=True)
        return jnp.maximum((h - mu) / jnp.sqrt(var + EPS) * g + be, 0.0)

    h = lin_bn_relu(x, params["w1"], params["b1"], params["g1"], params["be1"])
    h = lin_bn_relu(h, params["w2"], params["b2"], params["g2"], params["be2"])
    h = lin_bn_relu(h, params["w3"], params["b3"], params["g3"], params["be3"])
    h = jnp.tanh(jnp.dot(h.astype(matmul_dtype),
                         params["w4"].astype(matmul_dtype),
                         preferred_element_type=jnp.float32) + params["b4"])
    return h.reshape(h.shape[0], sequence_length, 4)


if __name__ == "__main__":
    batch = 8
    latent_dim = 16
    expression_dim = 16
    sequence_length = 8

    key = jax.random.PRNGKey(0)
    k_noise, k_expr, k_params, k_big = jax.random.split(key, 4)

    noise = jax.random.normal(k_noise, (batch, latent_dim), dtype=jnp.float32)
    expression = jax.random.normal(k_expr, (batch, expression_dim),
                                   dtype=jnp.float32)
    params = init_params(k_params, latent_dim, expression_dim, sequence_length)

    # One-time weight prep (cast / pad) outside the per-step path.
    prepared_bf16 = prepare_params(params, sequence_length, jnp.bfloat16)
    prepared_f32 = prepare_params(params, sequence_length, jnp.float32)

    fwd = jax.jit(functools.partial(generator_forward,
                                    sequence_length=sequence_length))

    # Fused path: bf16 matmuls (v6e/v7x MXU rate) and f32 matmuls (tight check).
    out_bf16 = jax.block_until_ready(fwd(noise, expression, prepared_bf16))
    out_f32 = jax.block_until_ready(fwd(noise, expression, prepared_f32))
    assert out_bf16.shape == (batch, sequence_length, 4)
    assert out_f32.shape == (batch, sequence_length, 4)

    ref_f32 = reference_forward(noise, expression, params, sequence_length,
                                matmul_dtype=jnp.float32)
    ref_bf16 = reference_forward(noise, expression, params, sequence_length,
                                 matmul_dtype=jnp.bfloat16)
    assert jnp.allclose(out_f32, ref_f32, atol=1e-4, rtol=1e-4)
    assert jnp.allclose(out_bf16, ref_bf16, atol=2e-3, rtol=1e-2)
    assert jnp.allclose(out_bf16, ref_f32, atol=5e-2, rtol=0.0)

    # Batch-tiled path: batch not a multiple of the tile, exercising the
    # partial-tile masking and cross-tile BatchNorm stats accumulation.
    big_batch = 20
    kb1, kb2 = jax.random.split(k_big)
    noise_b = jax.random.normal(kb1, (big_batch, latent_dim), dtype=jnp.float32)
    expr_b = jax.random.normal(kb2, (big_batch, expression_dim),
                               dtype=jnp.float32)

    fwd_tiled = jax.jit(functools.partial(
        generator_forward, sequence_length=sequence_length,
        m_tile=8, force_tiled=True))
    out_tiled = jax.block_until_ready(fwd_tiled(noise_b, expr_b, prepared_f32))
    assert out_tiled.shape == (big_batch, sequence_length, 4)
    ref_tiled = reference_forward(noise_b, expr_b, params, sequence_length,
                                  matmul_dtype=jnp.float32)
    assert jnp.allclose(out_tiled, ref_tiled, atol=1e-3, rtol=1e-4)

    print("KERNEL_OK")
</pallas_src>

<mosaic_0001>
module attributes {stable_mosaic.version = 11 : i64} {
  func.func @_fused_kernel(%arg0: memref<8x32xf32, #tpu.memory_space<vmem>>, %arg1: memref<32x128xbf16, #tpu.memory_space<vmem>>, %arg2: memref<1x128xf32, #tpu.memory_space<vmem>>, %arg3: memref<1x128xf32, #tpu.memory_space<vmem>>, %arg4: memref<128x256xbf16, #tpu.memory_space<vmem>>, %arg5: memref<1x256xf32, #tpu.memory_space<vmem>>, %arg6: memref<1x256xf32, #tpu.memory_space<vmem>>, %arg7: memref<256x512xbf16, #tpu.memory_space<vmem>>, %arg8: memref<1x512xf32, #tpu.memory_space<vmem>>, %arg9: memref<1x512xf32, #tpu.memory_space<vmem>>, %arg10: memref<512x128xbf16, #tpu.memory_space<vmem>>, %arg11: memref<1x128xf32, #tpu.memory_space<vmem>>, %arg12: memref<8x128xf32, #tpu.memory_space<vmem>>) attributes {dimension_semantics = [], scalar_prefetch = 0 : i64, scratch_operands = 0 : i64, tpu.core_type = #tpu.core_type<tc>} {
    %c0 = arith.constant 0 : index
    %c0_0 = arith.constant 0 : index
    %0 = vector.load %arg0[%c0, %c0_0] : memref<8x32xf32, #tpu.memory_space<vmem>>, vector<8x32xf32>
    %1 = arith.truncf %0 : vector<8x32xf32> to vector<8x32xbf16>
    %c0_1 = arith.constant 0 : index
    %c0_2 = arith.constant 0 : index
    %2 = vector.load %arg1[%c0_1, %c0_2] : memref<32x128xbf16, #tpu.memory_space<vmem>>, vector<32x128xbf16>
    %cst = arith.constant dense<0.000000e+00> : vector<8x128xf32>
    %3 = tpu.matmul %1, %2, %cst {dimension_numbers = #tpu.dot_dimension_numbers<[1], [0], [0], [1], [0, 0, 1, 1], [], []>} : vector<8x32xbf16>, vector<32x128xbf16>, vector<8x128xf32> -> vector<8x128xf32>
    %cst_3 = arith.constant dense<0.000000e+00> : vector<128xf32>
    %4 = vector.multi_reduction <add>, %3, %cst_3 [0] : vector<8x128xf32> to vector<128xf32>
    %5 = vector.shape_cast %4 : vector<128xf32> to vector<1x128xf32>
    %cst_4 = arith.constant 8.000000e+00 : f32
    %6 = vector.broadcast %cst_4 : f32 to vector<1x128xf32>
    %7 = arith.divf %5, %6 : vector<1x128xf32>
    %8 = vector.broadcast %7 : vector<1x128xf32> to vector<8x128xf32>
    %9 = arith.subf %3, %8 : vector<8x128xf32>
    %10 = arith.mulf %9, %9 : vector<8x128xf32>
    %cst_5 = arith.constant dense<0.000000e+00> : vector<128xf32>
    %11 = vector.multi_reduction <add>, %10, %cst_5 [0] : vector<8x128xf32> to vector<128xf32>
    %12 = vector.shape_cast %11 : vector<128xf32> to vector<1x128xf32>
    %cst_6 = arith.constant 8.000000e+00 : f32
    %13 = vector.broadcast %cst_6 : f32 to vector<1x128xf32>
    %14 = arith.divf %12, %13 : vector<1x128xf32>
    %c0_7 = arith.constant 0 : index
    %c0_8 = arith.constant 0 : index
    %15 = vector.load %arg2[%c0_7, %c0_8] : memref<1x128xf32, #tpu.memory_space<vmem>>, vector<1x128xf32>
    %cst_9 = arith.constant 9.99999974E-6 : f32
    %16 = vector.broadcast %cst_9 : f32 to vector<1x128xf32>
    %17 = arith.addf %14, %16 : vector<1x128xf32>
    %18 = math.rsqrt %17 : vector<1x128xf32>
    %19 = arith.mulf %15, %18 : vector<1x128xf32>
    %20 = vector.broadcast %19 : vector<1x128xf32> to vector<8x128xf32>
    %21 = arith.mulf %9, %20 : vector<8x128xf32>
    %c0_10 = arith.constant 0 : index
    %c0_11 = arith.constant 0 : index
    %22 = vector.load %arg3[%c0_10, %c0_11] : memref<1x128xf32, #tpu.memory_space<vmem>>, vector<1x128xf32>
    %23 = vector.broadcast %22 : vector<1x128xf32> to vector<8x128xf32>
    %24 = arith.addf %21, %23 : vector<8x128xf32>
    %cst_12 = arith.constant 0.000000e+00 : f32
    %25 = vector.broadcast %cst_12 : f32 to vector<8x128xf32>
    %26 = arith.maximumf %24, %25 : vector<8x128xf32>
    %27 = arith.truncf %26 : vector<8x128xf32> to vector<8x128xbf16>
    %c0_13 = arith.constant 0 : index
    %c0_14 = arith.constant 0 : index
    %28 = vector.load %arg4[%c0_13, %c0_14] : memref<128x256xbf16, #tpu.memory_space<vmem>>, vector<128x256xbf16>
    %cst_15 = arith.constant dense<0.000000e+00> : vector<8x256xf32>
    %29 = tpu.matmul %27, %28, %cst_15 {dimension_numbers = #tpu.dot_dimension_numbers<[1], [0], [0], [1], [0, 0, 1, 1], [], []>} : vector<8x128xbf16>, vector<128x256xbf16>, vector<8x256xf32> -> vector<8x256xf32>
    %cst_16 = arith.constant dense<0.000000e+00> : vector<256xf32>
    %30 = vector.multi_reduction <add>, %29, %cst_16 [0] : vector<8x256xf32> to vector<256xf32>
    %31 = vector.shape_cast %30 : vector<256xf32> to vector<1x256xf32>
    %cst_17 = arith.constant 8.000000e+00 : f32
    %32 = vector.broadcast %cst_17 : f32 to vector<1x256xf32>
    %33 = arith.divf %31, %32 : vector<1x256xf32>
    %34 = vector.broadcast %33 : vector<1x256xf32> to vector<8x256xf32>
    %35 = arith.subf %29, %34 : vector<8x256xf32>
    %36 = arith.mulf %35, %35 : vector<8x256xf32>
    %cst_18 = arith.constant dense<0.000000e+00> : vector<256xf32>
    %37 = vector.multi_reduction <add>, %36, %cst_18 [0] : vector<8x256xf32> to vector<256xf32>
    %38 = vector.shape_cast %37 : vector<256xf32> to vector<1x256xf32>
    %cst_19 = arith.constant 8.000000e+00 : f32
    %39 = vector.broadcast %cst_19 : f32 to vector<1x256xf32>
    %40 = arith.divf %38, %39 : vector<1x256xf32>
    %c0_20 = arith.constant 0 : index
    %c0_21 = arith.constant 0 : index
    %41 = vector.load %arg5[%c0_20, %c0_21] : memref<1x256xf32, #tpu.memory_space<vmem>>, vector<1x256xf32>
    %cst_22 = arith.constant 9.99999974E-6 : f32
    %42 = vector.broadcast %cst_22 : f32 to vector<1x256xf32>
    %43 = arith.addf %40, %42 : vector<1x256xf32>
    %44 = math.rsqrt %43 : vector<1x256xf32>
    %45 = arith.mulf %41, %44 : vector<1x256xf32>
    %46 = vector.broadcast %45 : vector<1x256xf32> to vector<8x256xf32>
    %47 = arith.mulf %35, %46 : vector<8x256xf32>
    %c0_23 = arith.constant 0 : index
    %c0_24 = arith.constant 0 : index
    %48 = vector.load %arg6[%c0_23, %c0_24] : memref<1x256xf32, #tpu.memory_space<vmem>>, vector<1x256xf32>
    %49 = vector.broadcast %48 : vector<1x256xf32> to vector<8x256xf32>
    %50 = arith.addf %47, %49 : vector<8x256xf32>
    %cst_25 = arith.constant 0.000000e+00 : f32
    %51 = vector.broadcast %cst_25 : f32 to vector<8x256xf32>
    %52 = arith.maximumf %50, %51 : vector<8x256xf32>
    %53 = arith.truncf %52 : vector<8x256xf32> to vector<8x256xbf16>
    %c0_26 = arith.constant 0 : index
    %c0_27 = arith.constant 0 : index
    %54 = vector.load %arg7[%c0_26, %c0_27] : memref<256x512xbf16, #tpu.memory_space<vmem>>, vector<256x512xbf16>
    %cst_28 = arith.constant dense<0.000000e+00> : vector<8x512xf32>
    %55 = tpu.matmul %53, %54, %cst_28 {dimension_numbers = #tpu.dot_dimension_numbers<[1], [0], [0], [1], [0, 0, 1, 1], [], []>} : vector<8x256xbf16>, vector<256x512xbf16>, vector<8x512xf32> -> vector<8x512xf32>
    %cst_29 = arith.constant dense<0.000000e+00> : vector<512xf32>
    %56 = vector.multi_reduction <add>, %55, %cst_29 [0] : vector<8x512xf32> to vector<512xf32>
    %57 = vector.shape_cast %56 : vector<512xf32> to vector<1x512xf32>
    %cst_30 = arith.constant 8.000000e+00 : f32
    %58 = vector.broadcast %cst_30 : f32 to vector<1x512xf32>
    %59 = arith.divf %57, %58 : vector<1x512xf32>
    %60 = vector.broadcast %59 : vector<1x512xf32> to vector<8x512xf32>
    %61 = arith.subf %55, %60 : vector<8x512xf32>
    %62 = arith.mulf %61, %61 : vector<8x512xf32>
    %cst_31 = arith.constant dense<0.000000e+00> : vector<512xf32>
    %63 = vector.multi_reduction <add>, %62, %cst_31 [0] : vector<8x512xf32> to vector<512xf32>
    %64 = vector.shape_cast %63 : vector<512xf32> to vector<1x512xf32>
    %cst_32 = arith.constant 8.000000e+00 : f32
    %65 = vector.broadcast %cst_32 : f32 to vector<1x512xf32>
    %66 = arith.divf %64, %65 : vector<1x512xf32>
    %c0_33 = arith.constant 0 : index
    %c0_34 = arith.constant 0 : index
    %67 = vector.load %arg8[%c0_33, %c0_34] : memref<1x512xf32, #tpu.memory_space<vmem>>, vector<1x512xf32>
    %cst_35 = arith.constant 9.99999974E-6 : f32
    %68 = vector.broadcast %cst_35 : f32 to vector<1x512xf32>
    %69 = arith.addf %66, %68 : vector<1x512xf32>
    %70 = math.rsqrt %69 : vector<1x512xf32>
    %71 = arith.mulf %67, %70 : vector<1x512xf32>
    %72 = vector.broadcast %71 : vector<1x512xf32> to vector<8x512xf32>
    %73 = arith.mulf %61, %72 : vector<8x512xf32>
    %c0_36 = arith.constant 0 : index
    %c0_37 = arith.constant 0 : index
    %74 = vector.load %arg9[%c0_36, %c0_37] : memref<1x512xf32, #tpu.memory_space<vmem>>, vector<1x512xf32>
    %75 = vector.broadcast %74 : vector<1x512xf32> to vector<8x512xf32>
    %76 = arith.addf %73, %75 : vector<8x512xf32>
    %cst_38 = arith.constant 0.000000e+00 : f32
    %77 = vector.broadcast %cst_38 : f32 to vector<8x512xf32>
    %78 = arith.maximumf %76, %77 : vector<8x512xf32>
    %79 = arith.truncf %78 : vector<8x512xf32> to vector<8x512xbf16>
    %c0_39 = arith.constant 0 : index
    %c0_40 = arith.constant 0 : index
    %80 = vector.load %arg10[%c0_39, %c0_40] : memref<512x128xbf16, #tpu.memory_space<vmem>>, vector<512x128xbf16>
    %cst_41 = arith.constant dense<0.000000e+00> : vector<8x128xf32>
    %81 = tpu.matmul %79, %80, %cst_41 {dimension_numbers = #tpu.dot_dimension_numbers<[1], [0], [0], [1], [0, 0, 1, 1], [], []>} : vector<8x512xbf16>, vector<512x128xbf16>, vector<8x128xf32> -> vector<8x128xf32>
    %c0_42 = arith.constant 0 : index
    %c0_43 = arith.constant 0 : index
    %82 = vector.load %arg11[%c0_42, %c0_43] : memref<1x128xf32, #tpu.memory_space<vmem>>, vector<1x128xf32>
    %83 = vector.broadcast %82 : vector<1x128xf32> to vector<8x128xf32>
    %84 = arith.addf %81, %83 : vector<8x128xf32>
    %85 = math.tanh %84 : vector<8x128xf32>
    %c0_44 = arith.constant 0 : index
    %c0_45 = arith.constant 0 : index
    %86 = vector.load %arg12[%c0_44, %c0_45] : memref<8x128xf32, #tpu.memory_space<vmem>>, vector<8x128xf32>
    tpu.vector_store %arg12[%c0_44, %c0_45], %85 {strides = array<i32>} : memref<8x128xf32, #tpu.memory_space<vmem>>, vector<8x128xf32>,
    return
  }
}

</mosaic_0001>

<llo_original>
// kernel: generator_forward.1
$region0: #{generator_forward.1}
  #allocation0 [shape = 'u32[]', space=smem, size = 0x4, offset = 0x4, fixed_abs, tag = 'smem constant byte address 0x4 - core index']
  #allocation1 [shape = 'u32[144,128]{1,0:T(1,128)}', space=vmem, size = 0x12000, scoped, tag = 'internal scratch']
  %s0 = inlined_call_operand.vmem [shape: f32[8,32], index: 0, kind: input, shape index: {}]
  %s1 = inlined_call_operand.vmem [shape: bf16[32,128], index: 1, kind: input, shape index: {}]
  %s2 = inlined_call_operand.vmem [shape: f32[1,128], index: 2, kind: input, shape index: {}]
  %s3 = inlined_call_operand.vmem [shape: f32[1,128], index: 3, kind: input, shape index: {}]
  %s4 = inlined_call_operand.hbm [shape: bf16[128,256], index: 4, kind: input, shape index: {}]
  %s5 = inlined_call_operand.vmem [shape: f32[1,256], index: 5, kind: input, shape index: {}]
  %s6 = inlined_call_operand.vmem [shape: f32[1,256], index: 6, kind: input, shape index: {}]
  %s7 = inlined_call_operand.hbm [shape: bf16[256,512], index: 7, kind: input, shape index: {}]
  %s8 = inlined_call_operand.vmem [shape: f32[1,512], index: 8, kind: input, shape index: {}]
  %s9 = inlined_call_operand.vmem [shape: f32[1,512], index: 9, kind: input, shape index: {}]
  %s10 = inlined_call_operand.hbm [shape: bf16[512,128], index: 10, kind: input, shape index: {}]
  %s11 = inlined_call_operand.vmem [shape: f32[1,128], index: 11, kind: input, shape index: {}]
  %s12 = inlined_call_operand.vmem [shape: f32[8,128], index: 12, kind: output, shape index: {}]
  %s13 = sld [smem:[#allocation0]]
  $region70: #{generator_forward.1} parent=0
    _
  %s15 = ssub.s32 1, %s13
  %s16 = scalar_select 0, %s15, %s13
  $region1: #{generator_forward.1} parent=0
    #allocation2 [shape = 'u8[65536]{0}', space=vmem, size = 0x10000, scoped, tag = 'input window, operand 4, single buffered']
    #allocation3 [shape = 's32[1]{0}', space=sflag, size = 0x4, scoped, tag = 'scoped memory for generator_forward.1']
    #allocation4 [shape = 'u8[262144]{0}', space=vmem, size = 0x40000, scoped, tag = 'input window, operand 7, single buffered']
    #allocation5 [shape = 's32[1]{0}', space=sflag, size = 0x4, scoped, tag = 'scoped memory for generator_forward.1']
    #allocation6 [shape = 'u8[131072]{0}', space=vmem, size = 0x20000, scoped, tag = 'input window, operand 10, single buffered']
    %17 = vsyncpa [#allocation3], 0
    %18 = vsyncpa [#allocation5], 0
    // Predicated region
    $region2: #{generator_forward.1} parent=1 // pred_check
      _
    $region3: #{generator_forward.1} parent=1 // pred_check_branch
      %20 = sbr.rel (0) target = $region5
    $region4: #{generator_forward.1} parent=1 // pred_region
      _
    $region5: #{generator_forward.1} parent=1 // pred_fallthru
      _
    // Predicated region
    $region6: #{generator_forward.1} parent=1 // pred_check
      _
    $region7: #{generator_forward.1} parent=1 // pred_check_branch
      %22 = sbr.rel (0) target = $region9
    $region8: #{generator_forward.1} parent=1 // pred_region
      _
    $region9: #{generator_forward.1} parent=1 // pred_fallthru
      _
    // Predicated region
    $region10: #{generator_forward.1} parent=1 // pred_check
      _
    $region11: #{generator_forward.1} parent=1 // pred_check_branch
      %24 = sbr.rel (0) target = $region13
    $region12: #{generator_forward.1} parent=1 // pred_region
      _
    $region13: #{generator_forward.1} parent=1 // pred_fallthru
      _
    // Predicated region
    $region14: #{generator_forward.1} parent=1 // pred_check
      _
    $region15: #{generator_forward.1} parent=1 // pred_check_branch
      %26 = sbr.rel (0) target = $region17
    $region16: #{generator_forward.1} parent=1 // pred_region
      _
    $region17: #{generator_forward.1} parent=1 // pred_fallthru
      _
    // Predicated region
    $region18: #{generator_forward.1} parent=1 // pred_check
      _
    $region19: #{generator_forward.1} parent=1 // pred_check_branch
      %28 = sbr.rel (0) target = $region21
    $region20: #{generator_forward.1} parent=1 // pred_region
      %s30 = ssub.s32 2048, 2048
      %31 = vsyncadd [#allocation3], %s30
      %s32 = sshll.u32 [#allocation2], 4
      %s33 = int_to_ptr.vmem [resolvable:$true] %s32
      %38 = dma.hbm_to_vmem [thread:$0]  %s4, 2048, %s33, [#allocation3], 128, 128, 8
    $region21: #{generator_forward.1} parent=1 // pred_fallthru
      _
    // Predicated region
    $region22: #{generator_forward.1} parent=1 // pred_check
      _
    $region23: #{generator_forward.1} parent=1 // pred_check_branch
      %40 = sbr.rel (0) target = $region25
    $region24: #{generator_forward.1} parent=1 // pred_region
      _
    $region25: #{generator_forward.1} parent=1 // pred_fallthru
      _
    // Predicated region
    $region26: #{generator_forward.1} parent=1 // pred_check
      _
    $region27: #{generator_forward.1} parent=1 // pred_check_branch
      %42 = sbr.rel (0) target = $region29
    $region28: #{generator_forward.1} parent=1 // pred_region
      _
    $region29: #{generator_forward.1} parent=1 // pred_fallthru
      _
    // Predicated region
    $region30: #{generator_forward.1} parent=1 // pred_check
      _
    $region31: #{generator_forward.1} parent=1 // pred_check_branch
      %44 = sbr.rel (0) target = $region33
    $region32: #{generator_forward.1} parent=1 // pred_region
      %s46 = ssub.s32 8192, 8192
      %47 = vsyncadd [#allocation5], %s46
      %s48 = sshll.u32 [#allocation4], 4
      %s49 = int_to_ptr.vmem [resolvable:$true] %s48
      %54 = dma.hbm_to_vmem [thread:$0]  %s7, 8192, %s49, [#allocation5], 256, 256, 16
    $region33: #{generator_forward.1} parent=1 // pred_fallthru
      _
    // Predicated region
    $region34: #{generator_forward.1} parent=1 // pred_check
      _
    $region35: #{generator_forward.1} parent=1 // pred_check_branch
      %56 = sbr.rel (0) target = $region37
    $region36: #{generator_forward.1} parent=1 // pred_region
      _
    $region37: #{generator_forward.1} parent=1 // pred_fallthru
      _
    // Predicated region
    $region38: #{generator_forward.1} parent=1 // pred_check
      _
    $region39: #{generator_forward.1} parent=1 // pred_check_branch
      %58 = sbr.rel (0) target = $region41
    $region40: #{generator_forward.1} parent=1 // pred_region
      _
    $region41: #{generator_forward.1} parent=1 // pred_fallthru
      _
    // Predicated region
    $region42: #{generator_forward.1} parent=1 // pred_check
      _
    $region43: #{generator_forward.1} parent=1 // pred_check_branch
      %60 = sbr.rel (0) target = $region45
    $region44: #{generator_forward.1} parent=1 // pred_region
      %s62 = ssub.s32 4096, 4096
      %63 = vsyncadd [#allocation5], %s62
      %s64 = sshll.u32 [#allocation6], 4
      %s65 = int_to_ptr.vmem [resolvable:$true] %s64
      %70 = dma.hbm_to_vmem [thread:$0]  %s10, 4096, %s65, [#allocation5], 64, 64, 4
    $region45: #{generator_forward.1} parent=1 // pred_fallthru
      _
    // Predicated region
    $region46: #{generator_forward.1} parent=1 // pred_check
      _
    $region47: #{generator_forward.1} parent=1 // pred_check_branch
      %72 = sbr.rel (0) target = $region49
    $region48: #{generator_forward.1} parent=1 // pred_region
      _
    $region49: #{generator_forward.1} parent=1 // pred_fallthru
      _
    // Predicated region
    $region50: #{generator_forward.1} parent=1 // pred_check
      _
    $region51: #{generator_forward.1} parent=1 // pred_check_branch
      %74 = sbr.rel (0) target = $region53
    $region52: #{generator_forward.1} parent=1 // pred_region
      %75 = dma.done [#allocation3], 2048
    $region53: #{generator_forward.1} parent=1 // pred_fallthru
      _
    // Predicated region
    $region54: #{generator_forward.1} parent=1 // pred_check
      _
    $region55: #{generator_forward.1} parent=1 // pred_check_branch
      %77 = sbr.rel (0) target = $region57
    $region56: #{generator_forward.1} parent=1 // pred_region
      %78 = dma.done [#allocation5], 8192
    $region57: #{generator_forward.1} parent=1 // pred_fallthru
      _
    // Predicated region
    $region58: #{generator_forward.1} parent=1 // pred_check
      _
    $region59: #{generator_forward.1} parent=1 // pred_check_branch
      %80 = sbr.rel (0) target = $region61
    $region60: #{generator_forward.1} parent=1 // pred_region
      %81 = dma.done [#allocation5], 4096
    $region61: #{generator_forward.1} parent=1 // pred_fallthru
      _
    %v83 = vld [vmem:[%s0] sm:$0xff]
    %v84 = vpack.c.bf16 %v83, %v83
    %v85 = vld [vmem:[%s1] sm:$0xf]
    %v86 = vld [vmem:[%s1 + $0x4] sm:$0xf]
    %v87 = vld [vmem:[%s1 + $0x8] sm:$0xf]
    %v88 = vld [vmem:[%s1 + $0xc] sm:$0xf]
    %v93 = vunpack.c.l.b16 %v85
    %v94 = vunpack.c.l.b16 %v86
    %v95 = vunpack.c.l.b16 %v87
    %v96 = vunpack.c.l.b16 %v88
    %v97 = vpack.c.b16 %v94, %v93
    %v98 = vpack.c.b16 %v96, %v95
    %vm101 = vcmask 261120
    %v103 = vsel %vm101, %v84, 0
    %105 = vmatprep.subr.bf16.mxu0 0
    %106 = vmatpush1.bf16.msra.mxu0 %v97
    %107 = vmatprep.subr.bf16.mxu0 0
    %108 = vmatpush1.bf16.msra.mxu0 %v98
    %109 = vmatprep.subr.bf16.mxu0 0
    %110 = vmatpush1.bf16.msra.mxu0 0
    %111 = vmatprep.subr.bf16.mxu0 0
    %112 = vmatpush1.bf16.msra.mxu0 0
    %113 = vmatprep.subr.bf16.mxu0 0
    %114 = vmatpush1.bf16.msra.mxu0 0
    %115 = vmatprep.subr.bf16.mxu0 0
    %116 = vmatpush1.bf16.msra.mxu0 0
    %117 = vmatprep.subr.bf16.mxu0 0
    %118 = vmatpush1.bf16.msra.mxu0 0
    %119 = vmatprep.subr.bf16.mxu0 0
    %120 = vmatpush1.bf16.msra.mxu0 0
    %121 = vmatprep.subr.bf16.mxu0 0
    %122 = vmatpush1.bf16.msra.mxu0 0
    %123 = vmatprep.subr.bf16.mxu0 0
    %124 = vmatpush1.bf16.msra.mxu0 0
    %125 = vmatprep.subr.bf16.mxu0 0
    %126 = vmatpush1.bf16.msra.mxu0 0
    %127 = vmatprep.subr.bf16.mxu0 0
    %128 = vmatpush1.bf16.msra.mxu0 0
    %129 = vmatprep.subr.bf16.mxu0 0
    %130 = vmatpush1.bf16.msra.mxu0 0
    %131 = vmatprep.subr.bf16.mxu0 0
    %132 = vmatpush1.bf16.msra.mxu0 0
    %133 = vmatprep.subr.bf16.mxu0 0
    %134 = vmatpush1.bf16.msra.mxu0 0
    %135 = vmatprep.subr.bf16.mxu0 0
    %136 = vmatpush1.bf16.msra.mxu0 0
    %137 = vmatprep.mubr.bf16.mxu0 0
    %138 = vmatmul.mubr.bf16.gmra.mrb[0].mxu0 %v103
    %v139 = vpop.f32.mrb[0].mxu0
    %v140 = vadd.f32 0.0, %v139
    %v141 = vpop.f32.mrb[0].mxu0
    %v142 = vpop.f32.mrb[0].mxu0
    %v143 = vpop.f32.mrb[0].mxu0
    %144 = vdwg.mxu0
    %v145 = vrot.slane %v140, 4
    %v146 = vadd.f32 %v140, %v145
    %v147 = vrot.slane %v146, 2
    %v148 = vadd.f32 %v146, %v147
    %v149 = vrot.slane %v148, 1
    %v150 = vadd.f32 %v148, %v149
    %v151 = vrcp.pop 8.0
    %v152 = vmul.f32 %v150, %v151
    %v153 = vsub.f32 %v140, %v152
    %v154 = vmul.f32 %v153, %v153
    %v155 = vrot.slane %v154, 4
    %v156 = vadd.f32 %v154, %v155
    %v157 = vrot.slane %v156, 2
    %v158 = vadd.f32 %v156, %v157
    %v159 = vrot.slane %v158, 1
    %v160 = vadd.f32 %v158, %v159
    %v161 = vmul.f32 %v160, %v151
    %v162 = vld [vmem:[%s2] sm:$0x1]
    %v163 = vadd.f32 %v161, 1e-05
    %v164 = vrsqrt.pop %v163
    %v165 = vmul.f32 %v162, %v164
    %v167 = vlaneseq
    %v168 = vshrl.u32 %v167, 7
    %v169 = vsub.s32 0, %v168
    %v170 = vrot.slane %v165, %v169
    %v172 = vmul.f32 %v153, %v170
    %v173 = vld [vmem:[%s3] sm:$0x1]
    %v175 = vlaneseq
    %v176 = vshrl.u32 %v175, 7
    %v177 = vsub.s32 0, %v176
    %v178 = vrot.slane %v173, %v177
    %v180 = vadd.f32 %v172, %v178
    %v181 = vmax.f32 %v180, 0.0
    %v182 = vpack.c.bf16 %v181, %v181
    %v183 = vld [vmem:[#allocation2] sm:$0xff]
    %v184 = vld [vmem:[#allocation2 + $0x8] sm:$0xff]
    %v185 = vld [vmem:[#allocation2 + $0x10] sm:$0xff]
    %v186 = vld [vmem:[#allocation2 + $0x18] sm:$0xff]
    %v187 = vld [vmem:[#allocation2 + $0x20] sm:$0xff]
    %v188 = vld [vmem:[#allocation2 + $0x28] sm:$0xff]
    %v189 = vld [vmem:[#allocation2 + $0x30] sm:$0xff]
    %v190 = vld [vmem:[#allocation2 + $0x38] sm:$0xff]
    %v191 = vld [vmem:[#allocation2 + $0x40] sm:$0xff]
    %v192 = vld [vmem:[#allocation2 + $0x48] sm:$0xff]
    %v193 = vld [vmem:[#allocation2 + $0x50] sm:$0xff]
    %v194 = vld [vmem:[#allocation2 + $0x58] sm:$0xff]
    %v195 = vld [vmem:[#allocation2 + $0x60] sm:$0xff]
    %v196 = vld [vmem:[#allocation2 + $0x68] sm:$0xff]
    %v197 = vld [vmem:[#allocation2 + $0x70] sm:$0xff]
    %v198 = vld [vmem:[#allocation2 + $0x78] sm:$0xff]
    %v215 = vunpack.c.l.b16 %v183
    %v216 = vunpack.c.h.b16 %v183
    %v217 = vunpack.c.l.b16 %v184
    %v218 = vunpack.c.h.b16 %v184
    %v219 = vunpack.c.l.b16 %v185
    %v220 = vunpack.c.h.b16 %v185
    %v221 = vunpack.c.l.b16 %v186
    %v222 = vunpack.c.h.b16 %v186
    %v223 = vunpack.c.l.b16 %v187
    %v224 = vunpack.c.h.b16 %v187
    %v225 = vunpack.c.l.b16 %v188
    %v226 = vunpack.c.h.b16 %v188
    %v227 = vunpack.c.l.b16 %v189
    %v228 = vunpack.c.h.b16 %v189
    %v229 = vunpack.c.l.b16 %v190
    %v230 = vunpack.c.h.b16 %v190
    %v231 = vunpack.c.l.b16 %v191
    %v232 = vunpack.c.h.b16 %v191
    %v233 = vunpack.c.l.b16 %v192
    %v234 = vunpack.c.h.b16 %v192
    %v235 = vunpack.c.l.b16 %v193
    %v236 = vunpack.c.h.b16 %v193
    %v237 = vunpack.c.l.b16 %v194
    %v238 = vunpack.c.h.b16 %v194
    %v239 = vunpack.c.l.b16 %v195
    %v240 = vunpack.c.h.b16 %v195
    %v241 = vunpack.c.l.b16 %v196
    %v242 = vunpack.c.h.b16 %v196
    %v243 = vunpack.c.l.b16 %v197
    %v244 = vunpack.c.h.b16 %v197
    %v245 = vunpack.c.l.b16 %v198
    %v246 = vunpack.c.h.b16 %v198
    %v247 = vpack.c.b16 %v217, %v215
    %v248 = vpack.c.b16 %v218, %v216
    %v249 = vpack.c.b16 %v221, %v219
    %v250 = vpack.c.b16 %v222, %v220
    %v251 = vpack.c.b16 %v225, %v223
    %v252 = vpack.c.b16 %v226, %v224
    %v253 = vpack.c.b16 %v229, %v227
    %v254 = vpack.c.b16 %v230, %v228
    %v255 = vpack.c.b16 %v233, %v231
    %v256 = vpack.c.b16 %v234, %v232
    %v257 = vpack.c.b16 %v237, %v235
    %v258 = vpack.c.b16 %v238, %v236
    %v259 = vpack.c.b16 %v241, %v239
    %v260 = vpack.c.b16 %v242, %v240
    %v261 = vpack.c.b16 %v245, %v243
    %v262 = vpack.c.b16 %v246, %v244
    %279 = vmatprep.subr.bf16.mxu0 %v248
    %280 = vmatpush1.bf16.msra.mxu0 %v247
    %281 = vmatprep.subr.bf16.mxu0 %v250
    %282 = vmatpush1.bf16.msra.mxu0 %v249
    %283 = vmatprep.subr.bf16.mxu0 %v252
    %284 = vmatpush1.bf16.msra.mxu0 %v251
    %285 = vmatprep.subr.bf16.mxu0 %v254
    %286 = vmatpush1.bf16.msra.mxu0 %v253
    %287 = vmatprep.subr.bf16.mxu0 %v256
    %288 = vmatpush1.bf16.msra.mxu0 %v255
    %289 = vmatprep.subr.bf16.mxu0 %v258
    %290 = vmatpush1.bf16.msra.mxu0 %v257
    %291 = vmatprep.subr.bf16.mxu0 %v260
    %292 = vmatpush1.bf16.msra.mxu0 %v259
    %293 = vmatprep.subr.bf16.mxu0 %v262
    %294 = vmatpush1.bf16.msra.mxu0 %v261
    %295 = vmatprep.subr.bf16.mxu0 0
    %296 = vmatpush1.bf16.msra.mxu0 0
    %297 = vmatprep.subr.bf16.mxu0 0
    %298 = vmatpush1.bf16.msra.mxu0 0
    %299 = vmatprep.subr.bf16.mxu0 0
    %300 = vmatpush1.bf16.msra.mxu0 0
    %301 = vmatprep.subr.bf16.mxu0 0
    %302 = vmatpush1.bf16.msra.mxu0 0
    %303 = vmatprep.subr.bf16.mxu0 0
    %304 = vmatpush1.bf16.msra.mxu0 0
    %305 = vmatprep.subr.bf16.mxu0 0
    %306 = vmatpush1.bf16.msra.mxu0 0
    %307 = vmatprep.subr.bf16.mxu0 0
    %308 = vmatpush1.bf16.msra.mxu0 0
    %309 = vmatprep.subr.bf16.mxu0 0
    %310 = vmatpush1.bf16.msra.mxu0 0
    %311 = vmatprep.mubr.bf16.mxu0 0
    %312 = vmatmul.mubr.bf16.gmra.mrb[0].mxu0 %v182
    %v313 = vpop.f32.mrb[0].mxu0
    %v314 = vadd.f32 0.0, %v313
    %v315 = vpop.f32.mrb[0].mxu0
    %v316 = vadd.f32 0.0, %v315
    %v317 = vpop.f32.mrb[0].mxu0
    %v318 = vpop.f32.mrb[0].mxu0
    %319 = vdwg.mxu0
    %v320 = vrot.slane %v314, 4
    %v321 = vadd.f32 %v314, %v320
    %v322 = vrot.slane %v321, 2
    %v323 = vadd.f32 %v321, %v322
    %v324 = vrot.slane %v323, 1
    %v325 = vadd.f32 %v323, %v324
    %v326 = vrot.slane %v316, 4
    %v327 = vadd.f32 %v316, %v326
    %v328 = vrot.slane %v327, 2
    %v329 = vadd.f32 %v327, %v328
    %v330 = vrot.slane %v329, 1
    %v331 = vadd.f32 %v329, %v330
    %v332 = vmul.f32 %v325, %v151
    %v333 = vmul.f32 %v331, %v151
    %v334 = vsub.f32 %v314, %v332
    %v335 = vsub.f32 %v316, %v333
    %v336 = vmul.f32 %v334, %v334
    %v337 = vmul.f32 %v335, %v335
    %v338 = vrot.slane %v336, 4
    %v339 = vadd.f32 %v336, %v338
    %v340 = vrot.slane %v339, 2
    %v341 = vadd.f32 %v339, %v340
    %v342 = vrot.slane %v341, 1
    %v343 = vadd.f32 %v341, %v342
    %v344 = vrot.slane %v337, 4
    %v345 = vadd.f32 %v337, %v344
    %v346 = vrot.slane %v345, 2
    %v347 = vadd.f32 %v345, %v346
    %v348 = vrot.slane %v347, 1
    %v349 = vadd.f32 %v347, %v348
    %v350 = vmul.f32 %v343, %v151
    %v351 = vmul.f32 %v349, %v151
    %v352 = vld [vmem:[%s5] sm:$0x3]
    %v353 = vadd.f32 %v350, 1e-05
    %v354 = vadd.f32 %v351, 1e-05
    %v355 = vrsqrt.pop %v353
    %v356 = vrsqrt.pop %v354
    %v359 = vcombine.low %v355, %v356
    %v361 = vunpack.c.l.s4 1966171168
    %v362 = vunpack.c.0.s8 %v361
    %v363 = vlaneseq
    %v364 = vshrl.u32 %v363, 7
    %v365 = vsub.s32 %v362, %v364
    %v366 = vrot.slane %v359, %v365
    %v368 = vunpack.c.l.s4 1966171168
    %v369 = vunpack.c.0.s8 %v368
    %v370 = vlaneseq
    %v371 = vshrl.u32 %v370, 7
    %v372 = vsub.s32 %v369, %v371
    %v373 = vrot.slane %v366, %v372
    %v375 = vmul.f32 %v352, %v373
    %v377 = vlaneseq
    %v378 = vshrl.u32 %v377, 7
    %v379 = vsub.s32 0, %v378
    %v380 = vrot.slane %v375, %v379
    %v381 = vlaneseq
    %v382 = vshrl.u32 %v381, 7
    %v383 = vsub.s32 1, %v382
    %v384 = vrot.slane %v375, %v383
    %v387 = vmul.f32 %v334, %v380
    %v388 = vmul.f32 %v335, %v384
    %v389 = vld [vmem:[%s6] sm:$0x3]
    %v391 = vlaneseq
    %v392 = vshrl.u32 %v391, 7
    %v393 = vsub.s32 0, %v392
    %v394 = vrot.slane %v389, %v393
    %v395 = vlaneseq
    %v396 = vshrl.u32 %v395, 7
    %v397 = vsub.s32 1, %v396
    %v398 = vrot.slane %v389, %v397
    %v401 = vadd.f32 %v387, %v394
    %v402 = vadd.f32 %v388, %v398
    %v403 = vmax.f32 %v401, 0.0
    %v404 = vmax.f32 %v402, 0.0
    %v405 = vpack.c.bf16 %v403, %v403
    %v406 = vpack.c.bf16 %v404, %v404
    %v407 = vld [vmem:[#allocation4] sm:$0xff]
    %v408 = vld [vmem:[#allocation4 + $0x8] sm:$0xff]
    %v409 = vld [vmem:[#allocation4 + $0x10] sm:$0xff]
    %v410 = vld [vmem:[#allocation4 + $0x18] sm:$0xff]
    %v411 = vld [vmem:[#allocation4 + $0x20] sm:$0xff]
    %v412 = vld [vmem:[#allocation4 + $0x28] sm:$0xff]
    %v413 = vld [vmem:[#allocation4 + $0x30] sm:$0xff]
    %v414 = vld [vmem:[#allocation4 + $0x38] sm:$0xff]
    %v415 = vld [vmem:[#allocation4 + $0x40] sm:$0xff]
    %v416 = vld [vmem:[#allocation4 + $0x48] sm:$0xff]
    %v417 = vld [vmem:[#allocation4 + $0x50] sm:$0xff]
    %v418 = vld [vmem:[#allocation4 + $0x58] sm:$0xff]
    %v419 = vld [vmem:[#allocation4 + $0x60] sm:$0xff]
    %v420 = vld [vmem:[#allocation4 + $0x68] sm:$0xff]
    %v421 = vld [vmem:[#allocation4 + $0x70] sm:$0xff]
    %v422 = vld [vmem:[#allocation4 + $0x78] sm:$0xff]
    %v423 = vld [vmem:[#allocation4 + $0x80] sm:$0xff]
    %v424 = vld [vmem:[#allocation4 + $0x88] sm:$0xff]
    %v425 = vld [vmem:[#allocation4 + $0x90] sm:$0xff]
    %v426 = vld [vmem:[#allocation4 + $0x98] sm:$0xff]
    %v427 = vld [vmem:[#allocation4 + $0xa0] sm:$0xff]
    %v428 = vld [vmem:[#allocation4 + $0xa8] sm:$0xff]
    %v429 = vld [vmem:[#allocation4 + $0xb0] sm:$0xff]
    %v430 = vld [vmem:[#allocation4 + $0xb8] sm:$0xff]
    %v431 = vld [vmem:[#allocation4 + $0xc0] sm:$0xff]
    %v432 = vld [vmem:[#allocation4 + $0xc8] sm:$0xff]
    %v433 = vld [vmem:[#allocation4 + $0xd0] sm:$0xff]
    %v434 = vld [vmem:[#allocation4 + $0xd8] sm:$0xff]
    %v435 = vld [vmem:[#allocation4 + $0xe0] sm:$0xff]
    %v436 = vld [vmem:[#allocation4 + $0xe8] sm:$0xff]
    %v437 = vld [vmem:[#allocation4 + $0xf0] sm:$0xff]
    %v438 = vld [vmem:[#allocation4 + $0xf8] sm:$0xff]
    %v439 = vld [vmem:[#allocation4 + $0x100] sm:$0xff]
    %v440 = vld [vmem:[#allocation4 + $0x108] sm:$0xff]
    %v441 = vld [vmem:[#allocation4 + $0x110] sm:$0xff]
    %v442 = vld [vmem:[#allocation4 + $0x118] sm:$0xff]
    %v443 = vld [vmem:[#allocation4 + $0x120] sm:$0xff]
    %v444 = vld [vmem:[#allocation4 + $0x128] sm:$0xff]
    %v445 = vld [vmem:[#allocation4 + $0x130] sm:$0xff]
    %v446 = vld [vmem:[#allocation4 + $0x138] sm:$0xff]
    %v447 = vld [vmem:[#allocation4 + $0x140] sm:$0xff]
    %v448 = vld [vmem:[#allocation4 + $0x148] sm:$0xff]
    %v449 = vld [vmem:[#allocation4 + $0x150] sm:$0xff]
    %v450 = vld [vmem:[#allocation4 + $0x158] sm:$0xff]
    %v451 = vld [vmem:[#allocation4 + $0x160] sm:$0xff]
    %v452 = vld [vmem:[#allocation4 + $0x168] sm:$0xff]
    %v453 = vld [vmem:[#allocation4 + $0x170] sm:$0xff]
    %v454 = vld [vmem:[#allocation4 + $0x178] sm:$0xff]
    %v455 = vld [vmem:[#allocation4 + $0x180] sm:$0xff]
    %v456 = vld [vmem:[#allocation4 + $0x188] sm:$0xff]
    %v457 = vld [vmem:[#allocation4 + $0x190] sm:$0xff]
    %v458 = vld [vmem:[#allocation4 + $0x198] sm:$0xff]
    %v459 = vld [vmem:[#allocation4 + $0x1a0] sm:$0xff]
    %v460 = vld [vmem:[#allocation4 + $0x1a8] sm:$0xff]
    %v461 = vld [vmem:[#allocation4 + $0x1b0] sm:$0xff]
    %v462 = vld [vmem:[#allocation4 + $0x1b8] sm:$0xff]
    %v463 = vld [vmem:[#allocation4 + $0x1c0] sm:$0xff]
    %v464 = vld [vmem:[#allocation4 + $0x1c8] sm:$0xff]
    %v465 = vld [vmem:[#allocation4 + $0x1d0] sm:$0xff]
    %v466 = vld [vmem:[#allocation4 + $0x1d8] sm:$0xff]
    %v467 = vld [vmem:[#allocation4 + $0x1e0] sm:$0xff]
    %v468 = vld [vmem:[#allocation4 + $0x1e8] sm:$0xff]
    %v469 = vld [vmem:[#allocation4 + $0x1f0] sm:$0xff]
    %v470 = vld [vmem:[#allocation4 + $0x1f8] sm:$0xff]
    %v535 = vunpack.c.l.b16 %v407
    %v536 = vunpack.c.h.b16 %v407
    %v537 = vunpack.c.l.b16 %v408
    %v538 = vunpack.c.h.b16 %v408
    %v539 = vunpack.c.l.b16 %v409
    %v540 = vunpack.c.h.b16 %v409
    %v541 = vunpack.c.l.b16 %v410
    %v542 = vunpack.c.h.b16 %v410
    %v543 = vunpack.c.l.b16 %v411
    %v544 = vunpack.c.h.b16 %v411
    %v545 = vunpack.c.l.b16 %v412
    %v546 = vunpack.c.h.b16 %v412
    %v547 = vunpack.c.l.b16 %v413
    %v548 = vunpack.c.h.b16 %v413
    %v549 = vunpack.c.l.b16 %v414
    %v550 = vunpack.c.h.b16 %v414
    %v551 = vunpack.c.l.b16 %v415
    %v552 = vunpack.c.h.b16 %v415
    %v553 = vunpack.c.l.b16 %v416
    %v554 = vunpack.c.h.b16 %v416
    %v555 = vunpack.c.l.b16 %v417
    %v556 = vunpack.c.h.b16 %v417
    %v557 = vunpack.c.l.b16 %v418
    %v558 = vunpack.c.h.b16 %v418
    %v559 = vunpack.c.l.b16 %v419
    %v560 = vunpack.c.h.b16 %v419
    %v561 = vunpack.c.l.b16 %v420
    %v562 = vunpack.c.h.b16 %v420
    %v563 = vunpack.c.l.b16 %v421
    %v564 = vunpack.c.h.b16 %v421
    %v565 = vunpack.c.l.b16 %v422
    %v566 = vunpack.c.h.b16 %v422
    %v567 = vunpack.c.l.b16 %v423
    %v568 = vunpack.c.h.b16 %v423
    %v569 = vunpack.c.l.b16 %v424
    %v570 = vunpack.c.h.b16 %v424
    %v571 = vunpack.c.l.b16 %v425
    %v572 = vunpack.c.h.b16 %v425
    %v573 = vunpack.c.l.b16 %v426
    %v574 = vunpack.c.h.b16 %v426
    %v575 = vunpack.c.l.b16 %v427
    %v576 = vunpack.c.h.b16 %v427
    %v577 = vunpack.c.l.b16 %v428
    %v578 = vunpack.c.h.b16 %v428
    %v579 = vunpack.c.l.b16 %v429
    %v580 = vunpack.c.h.b16 %v429
    %v581 = vunpack.c.l.b16 %v430
    %v582 = vunpack.c.h.b16 %v430
    %v583 = vunpack.c.l.b16 %v431
    %v584 = vunpack.c.h.b16 %v431
    %v585 = vunpack.c.l.b16 %v432
    %v586 = vunpack.c.h.b16 %v432
    %v587 = vunpack.c.l.b16 %v433
    %v588 = vunpack.c.h.b16 %v433
    %v589 = vunpack.c.l.b16 %v434
    %v590 = vunpack.c.h.b16 %v434
    %v591 = vunpack.c.l.b16 %v435
    %v592 = vunpack.c.h.b16 %v435
    %v593 = vunpack.c.l.b16 %v436
    %v594 = vunpack.c.h.b16 %v436
    %v595 = vunpack.c.l.b16 %v437
    %v596 = vunpack.c.h.b16 %v437
    %v597 = vunpack.c.l.b16 %v438
    %v598 = vunpack.c.h.b16 %v438
    %v599 = vunpack.c.l.b16 %v439
    %v600 = vunpack.c.h.b16 %v439
    %v601 = vunpack.c.l.b16 %v440
    %v602 = vunpack.c.h.b16 %v440
    %v603 = vunpack.c.l.b16 %v441
    %v604 = vunpack.c.h.b16 %v441
    %v605 = vunpack.c.l.b16 %v442
    %v606 = vunpack.c.h.b16 %v442
    %v607 = vunpack.c.l.b16 %v443
    %v608 = vunpack.c.h.b16 %v443
    %v609 = vunpack.c.l.b16 %v444
    %v610 = vunpack.c.h.b16 %v444
    %v611 = vunpack.c.l.b16 %v445
    %v612 = vunpack.c.h.b16 %v445
    %v613 = vunpack.c.l.b16 %v446
    %v614 = vunpack.c.h.b16 %v446
    %v615 = vunpack.c.l.b16 %v447
    %v616 = vunpack.c.h.b16 %v447
    %v617 = vunpack.c.l.b16 %v448
    %v618 = vunpack.c.h.b16 %v448
    %v619 = vunpack.c.l.b16 %v449
    %v620 = vunpack.c.h.b16 %v449
    %v621 = vunpack.c.l.b16 %v450
    %v622 = vunpack.c.h.b16 %v450
    %v623 = vunpack.c.l.b16 %v451
    %v624 = vunpack.c.h.b16 %v451
    %v625 = vunpack.c.l.b16 %v452
    %v626 = vunpack.c.h.b16 %v452
    %v627 = vunpack.c.l.b16 %v453
    %v628 = vunpack.c.h.b16 %v453
    %v629 = vunpack.c.l.b16 %v454
    %v630 = vunpack.c.h.b16 %v454
    %v631 = vunpack.c.l.b16 %v455
    %v632 = vunpack.c.h.b16 %v455
    %v633 = vunpack.c.l.b16 %v456
    %v634 = vunpack.c.h.b16 %v456
    %v635 = vunpack.c.l.b16 %v457
    %v636 = vunpack.c.h.b16 %v457
    %v637 = vunpack.c.l.b16 %v458
    %v638 = vunpack.c.h.b16 %v458
    %v639 = vunpack.c.l.b16 %v459
    %v640 = vunpack.c.h.b16 %v459
    %v641 = vunpack.c.l.b16 %v460
    %v642 = vunpack.c.h.b16 %v460
    %v643 = vunpack.c.l.b16 %v461
    %v644 = vunpack.c.h.b16 %v461
    %v645 = vunpack.c.l.b16 %v462
    %v646 = vunpack.c.h.b16 %v462
    %v647 = vunpack.c.l.b16 %v463
    %v648 = vunpack.c.h.b16 %v463
    %v649 = vunpack.c.l.b16 %v464
    %v650 = vunpack.c.h.b16 %v464
    %v651 = vunpack.c.l.b16 %v465
    %v652 = vunpack.c.h.b16 %v465
    %v653 = vunpack.c.l.b16 %v466
    %v654 = vunpack.c.h.b16 %v466
    %v655 = vunpack.c.l.b16 %v467
    %v656 = vunpack.c.h.b16 %v467
    %v657 = vunpack.c.l.b16 %v468
    %v658 = vunpack.c.h.b16 %v468
    %v659 = vunpack.c.l.b16 %v469
    %v660 = vunpack.c.h.b16 %v469
    %v661 = vunpack.c.l.b16 %v470
    %v662 = vunpack.c.h.b16 %v470
    %v663 = vpack.c.b16 %v539, %v535
    %v664 = vpack.c.b16 %v540, %v536
    %v665 = vpack.c.b16 %v541, %v537
    %v666 = vpack.c.b16 %v542, %v538
    %v667 = vpack.c.b16 %v547, %v543
    %v668 = vpack.c.b16 %v548, %v544
    %v669 = vpack.c.b16 %v549, %v545
    %v670 = vpack.c.b16 %v550, %v546
    %v671 = vpack.c.b16 %v555, %v551
    %v672 = vpack.c.b16 %v556, %v552
    %v673 = vpack.c.b16 %v557, %v553
    %v674 = vpack.c.b16 %v558, %v554
    %v675 = vpack.c.b16 %v563, %v559
    %v676 = vpack.c.b16 %v564, %v560
    %v677 = vpack.c.b16 %v565, %v561
    %v678 = vpack.c.b16 %v566, %v562
    %v679 = vpack.c.b16 %v571, %v567
    %v680 = vpack.c.b16 %v572, %v568
    %v681 = vpack.c.b16 %v573, %v569
    %v682 = vpack.c.b16 %v574, %v570
    %v683 = vpack.c.b16 %v579, %v575
    %v684 = vpack.c.b16 %v580, %v576
    %v685 = vpack.c.b16 %v581, %v577
    %v686 = vpack.c.b16 %v582, %v578
    %v687 = vpack.c.b16 %v587, %v583
    %v688 = vpack.c.b16 %v588, %v584
    %v689 = vpack.c.b16 %v589, %v585
    %v690 = vpack.c.b16 %v590, %v586
    %v691 = vpack.c.b16 %v595, %v591
    %v692 = vpack.c.b16 %v596, %v592
    %v693 = vpack.c.b16 %v597, %v593
    %v694 = vpack.c.b16 %v598, %v594
    %v695 = vpack.c.b16 %v603, %v599
    %v696 = vpack.c.b16 %v604, %v600
    %v697 = vpack.c.b16 %v605, %v601
    %v698 = vpack.c.b16 %v606, %v602
    %v699 = vpack.c.b16 %v611, %v607
    %v700 = vpack.c.b16 %v612, %v608
    %v701 = vpack.c.b16 %v613, %v609
    %v702 = vpack.c.b16 %v614, %v610
    %v703 = vpack.c.b16 %v619, %v615
    %v704 = vpack.c.b16 %v620, %v616
    %v705 = vpack.c.b16 %v621, %v617
    %v706 = vpack.c.b16 %v622, %v618
    %v707 = vpack.c.b16 %v627, %v623
    %v708 = vpack.c.b16 %v628, %v624
    %v709 = vpack.c.b16 %v629, %v625
    %v710 = vpack.c.b16 %v630, %v626
    %v711 = vpack.c.b16 %v635, %v631
    %v712 = vpack.c.b16 %v636, %v632
    %v713 = vpack.c.b16 %v637, %v633
    %v714 = vpack.c.b16 %v638, %v634
    %v715 = vpack.c.b16 %v643, %v639
    %v716 = vpack.c.b16 %v644, %v640
    %v717 = vpack.c.b16 %v645, %v641
    %v718 = vpack.c.b16 %v646, %v642
    %v719 = vpack.c.b16 %v651, %v647
    %v720 = vpack.c.b16 %v652, %v648
    %v721 = vpack.c.b16 %v653, %v649
    %v722 = vpack.c.b16 %v654, %v650
    %v723 = vpack.c.b16 %v659, %v655
    %v724 = vpack.c.b16 %v660, %v656
    %v725 = vpack.c.b16 %v661, %v657
    %v726 = vpack.c.b16 %v662, %v658
    %791 = vmatprep.subr.bf16.mxu0 %v664
    %792 = vmatpush1.bf16.msra.mxu0 %v663
    %793 = vmatprep.subr.bf16.mxu0 %v668
    %794 = vmatpush1.bf16.msra.mxu0 %v667
    %795 = vmatprep.subr.bf16.mxu0 %v672
    %796 = vmatpush1.bf16.msra.mxu0 %v671
    %797 = vmatprep.subr.bf16.mxu0 %v676
    %798 = vmatpush1.bf16.msra.mxu0 %v675
    %799 = vmatprep.subr.bf16.mxu0 %v680
    %800 = vmatpush1.bf16.msra.mxu0 %v679
    %801 = vmatprep.subr.bf16.mxu0 %v684
    %802 = vmatpush1.bf16.msra.mxu0 %v683
    %803 = vmatprep.subr.bf16.mxu0 %v688
    %804 = vmatpush1.bf16.msra.mxu0 %v687
    %805 = vmatprep.subr.bf16.mxu0 %v692
    %806 = vmatpush1.bf16.msra.mxu0 %v691
    %807 = vmatprep.subr.bf16.mxu0 %v696
    %808 = vmatpush1.bf16.msra.mxu0 %v695
    %809 = vmatprep.subr.bf16.mxu0 %v700
    %810 = vmatpush1.bf16.msra.mxu0 %v699
    %811 = vmatprep.subr.bf16.mxu0 %v704
    %812 = vmatpush1.bf16.msra.mxu0 %v703
    %813 = vmatprep.subr.bf16.mxu0 %v708
    %814 = vmatpush1.bf16.msra.mxu0 %v707
    %815 = vmatprep.subr.bf16.mxu0 %v712
    %816 = vmatpush1.bf16.msra.mxu0 %v711
    %817 = vmatprep.subr.bf16.mxu0 %v716
    %818 = vmatpush1.bf16.msra.mxu0 %v715
    %819 = vmatprep.subr.bf16.mxu0 %v720
    %820 = vmatpush1.bf16.msra.mxu0 %v719
    %821 = vmatprep.subr.bf16.mxu0 %v724
    %822 = vmatpush1.bf16.msra.mxu0 %v723
    %823 = vmatprep.mubr.bf16.mxu0 %v406
    %824 = vmatmul.mubr.bf16.gmra.mrb[0].mxu0 %v405
    %v825 = vpop.f32.mrb[0].mxu0
    %v826 = vadd.f32 0.0, %v825
    %v827 = vpop.f32.mrb[0].mxu0
    %v828 = vadd.f32 0.0, %v827
    %v829 = vpop.f32.mrb[0].mxu0
    %v830 = vpop.f32.mrb[0].mxu0
    %831 = vdwg.mxu0
    %832 = vmatprep.subr.bf16.mxu0 %v666
    %833 = vmatpush1.bf16.msra.mxu0 %v665
    %834 = vmatprep.subr.bf16.mxu0 %v670
    %835 = vmatpush1.bf16.msra.mxu0 %v669
    %836 = vmatprep.subr.bf16.mxu0 %v674
    %837 = vmatpush1.bf16.msra.mxu0 %v673
    %838 = vmatprep.subr.bf16.mxu0 %v678
    %839 = vmatpush1.bf16.msra.mxu0 %v677
    %840 = vmatprep.subr.bf16.mxu0 %v682
    %841 = vmatpush1.bf16.msra.mxu0 %v681
    %842 = vmatprep.subr.bf16.mxu0 %v686
    %843 = vmatpush1.bf16.msra.mxu0 %v685
    %844 = vmatprep.subr.bf16.mxu0 %v690
    %845 = vmatpush1.bf16.msra.mxu0 %v689
    %846 = vmatprep.subr.bf16.mxu0 %v694
    %847 = vmatpush1.bf16.msra.mxu0 %v693
    %848 = vmatprep.subr.bf16.mxu0 %v698
    %849 = vmatpush1.bf16.msra.mxu0 %v697
    %850 = vmatprep.subr.bf16.mxu0 %v702
    %851 = vmatpush1.bf16.msra.mxu0 %v701
    %852 = vmatprep.subr.bf16.mxu0 %v706
    %853 = vmatpush1.bf16.msra.mxu0 %v705
    %854 = vmatprep.subr.bf16.mxu0 %v710
    %855 = vmatpush1.bf16.msra.mxu0 %v709
    %856 = vmatprep.subr.bf16.mxu0 %v714
    %857 = vmatpush1.bf16.msra.mxu0 %v713
    %858 = vmatprep.subr.bf16.mxu0 %v718
    %859 = vmatpush1.bf16.msra.mxu0 %v717
    %860 = vmatprep.subr.bf16.mxu0 %v722
    %861 = vmatpush1.bf16.msra.mxu0 %v721
    %862 = vmatprep.subr.bf16.mxu0 %v726
    %863 = vmatpush1.bf16.msra.mxu0 %v725
    %864 = vmatprep.mubr.bf16.mxu0 %v406
    %865 = vmatmul.mubr.bf16.gmra.mrb[0].mxu0 %v405
    %v866 = vpop.f32.mrb[0].mxu0
    %v867 = vadd.f32 0.0, %v866
    %v868 = vpop.f32.mrb[0].mxu0
    %v869 = vadd.f32 0.0, %v868
    %v870 = vpop.f32.mrb[0].mxu0
    %v871 = vpop.f32.mrb[0].mxu0
    %872 = vdwg.mxu0
    %v873 = vrot.slane %v826, 4
    %v874 = vadd.f32 %v826, %v873
    %v875 = vrot.slane %v874, 2
    %v876 = vadd.f32 %v874, %v875
    %v877 = vrot.slane %v876, 1
    %v878 = vadd.f32 %v876, %v877
    %v879 = vrot.slane %v828, 4
    %v880 = vadd.f32 %v828, %v879
    %v881 = vrot.slane %v880, 2
    %v882 = vadd.f32 %v880, %v881
    %v883 = vrot.slane %v882, 1
    %v884 = vadd.f32 %v882, %v883
    %v885 = vrot.slane %v867, 4
    %v886 = vadd.f32 %v867, %v885
    %v887 = vrot.slane %v886, 2
    %v888 = vadd.f32 %v886, %v887
    %v889 = vrot.slane %v888, 1
    %v890 = vadd.f32 %v888, %v889
    %v891 = vrot.slane %v869, 4
    %v892 = vadd.f32 %v869, %v891
    %v893 = vrot.slane %v892, 2
    %v894 = vadd.f32 %v892, %v893
    %v895 = vrot.slane %v894, 1
    %v896 = vadd.f32 %v894, %v895
    %v897 = vmul.f32 %v878, %v151
    %v898 = vmul.f32 %v884, %v151
    %v899 = vmul.f32 %v890, %v151
    %v900 = vmul.f32 %v896, %v151
    %v901 = vsub.f32 %v826, %v897
    %v902 = vsub.f32 %v828, %v898
    %v903 = vsub.f32 %v867, %v899
    %v904 = vsub.f32 %v869, %v900
    %v905 = vmul.f32 %v901, %v901
    %v906 = vmul.f32 %v902, %v902
    %v907 = vmul.f32 %v903, %v903
    %v908 = vmul.f32 %v904, %v904
    %v909 = vrot.slane %v905, 4
    %v910 = vadd.f32 %v905, %v909
    %v911 = vrot.slane %v910, 2
    %v912 = vadd.f32 %v910, %v911
    %v913 = vrot.slane %v912, 1
    %v914 = vadd.f32 %v912, %v913
    %v915 = vrot.slane %v906, 4
    %v916 = vadd.f32 %v906, %v915
    %v917 = vrot.slane %v916, 2
    %v918 = vadd.f32 %v916, %v917
    %v919 = vrot.slane %v918, 1
    %v920 = vadd.f32 %v918, %v919
    %v921 = vrot.slane %v907, 4
    %v922 = vadd.f32 %v907, %v921
    %v923 = vrot.slane %v922, 2
    %v924 = vadd.f32 %v922, %v923
    %v925 = vrot.slane %v924, 1
    %v926 = vadd.f32 %v924, %v925
    %v927 = vrot.slane %v908, 4
    %v928 = vadd.f32 %v908, %v927
    %v929 = vrot.slane %v928, 2
    %v930 = vadd.f32 %v928, %v929
    %v931 = vrot.slane %v930, 1
    %v932 = vadd.f32 %v930, %v931
    %v933 = vmul.f32 %v914, %v151
    %v934 = vmul.f32 %v920, %v151
    %v935 = vmul.f32 %v926, %v151
    %v936 = vmul.f32 %v932, %v151
    %v937 = vld [vmem:[%s8] sm:$0xf]
    %v938 = vadd.f32 %v933, 1e-05
    %v939 = vadd.f32 %v934, 1e-05
    %v940 = vadd.f32 %v935, 1e-05
    %v941 = vadd.f32 %v936, 1e-05
    %v942 = vrsqrt.pop %v938
    %v943 = vrsqrt.pop %v939
    %v944 = vrsqrt.pop %v940
    %v945 = vrsqrt.pop %v941
    %v950 = vcombine.low %v942, %v943
    %v951 = vcombine.low %v944, %v945
    %v953 = vunpack.c.l.s4 1966171168
    %v954 = vunpack.c.0.s8 %v953
    %v955 = vlaneseq
    %v956 = vshrl.u32 %v955, 7
    %v957 = vsub.s32 %v954, %v956
    %v958 = vrot.slane %v950, %v957
    %v960 = vunpack.c.l.s4 1966171168
    %v961 = vunpack.c.0.s8 %v960
    %v962 = vlaneseq
    %v963 = vshrl.u32 %v962, 7
    %v964 = vsub.s32 %v961, %v963
    %v965 = vrot.slane %v951, %v964
    %v966 = vcombine.low %v958, %v965
    %v968 = vunpack.c.l.s4 1966171168
    %v969 = vunpack.c.0.s8 %v968
    %v970 = vlaneseq
    %v971 = vshrl.u32 %v970, 7
    %v972 = vsub.s32 %v969, %v971
    %v973 = vrot.slane %v966, %v972
    %v975 = vmul.f32 %v937, %v973
    %v977 = vlaneseq
    %v978 = vshrl.u32 %v977, 7
    %v979 = vsub.s32 0, %v978
    %v980 = vrot.slane %v975, %v979
    %v981 = vlaneseq
    %v982 = vshrl.u32 %v981, 7
    %v983 = vsub.s32 1, %v982
    %v984 = vrot.slane %v975, %v983
    %v985 = vlaneseq
    %v986 = vshrl.u32 %v985, 7
    %v987 = vsub.s32 2, %v986
    %v988 = vrot.slane %v975, %v987
    %v989 = vlaneseq
    %v990 = vshrl.u32 %v989, 7
    %v991 = vsub.s32 3, %v990
    %v992 = vrot.slane %v975, %v991
    %v997 = vmul.f32 %v901, %v980
    %v998 = vmul.f32 %v902, %v984
    %v999 = vmul.f32 %v903, %v988
    %v1000 = vmul.f32 %v904, %v992
    %v1001 = vld [vmem:[%s9] sm:$0xf]
    %v1003 = vlaneseq
    %v1004 = vshrl.u32 %v1003, 7
    %v1005 = vsub.s32 0, %v1004
    %v1006 = vrot.slane %v1001, %v1005
    %v1007 = vlaneseq
    %v1008 = vshrl.u32 %v1007, 7
    %v1009 = vsub.s32 1, %v1008
    %v1010 = vrot.slane %v1001, %v1009
    %v1011 = vlaneseq
    %v1012 = vshrl.u32 %v1011, 7
    %v1013 = vsub.s32 2, %v1012
    %v1014 = vrot.slane %v1001, %v1013
    %v1015 = vlaneseq
    %v1016 = vshrl.u32 %v1015, 7
    %v1017 = vsub.s32 3, %v1016
    %v1018 = vrot.slane %v1001, %v1017
    %v1023 = vadd.f32 %v997, %v1006
    %v1024 = vadd.f32 %v998, %v1010
    %v1025 = vadd.f32 %v999, %v1014
    %v1026 = vadd.f32 %v1000, %v1018
    %v1027 = vmax.f32 %v1023, 0.0
    %v1028 = vmax.f32 %v1024, 0.0
    %v1029 = vmax.f32 %v1025, 0.0
    %v1030 = vmax.f32 %v1026, 0.0
    %v1031 = vpack.c.bf16 %v1027, %v1027
    %v1032 = vpack.c.bf16 %v1028, %v1028
    %v1033 = vpack.c.bf16 %v1029, %v1029
    %v1034 = vpack.c.bf16 %v1030, %v1030
    %v1035 = vld [vmem:[#allocation6] sm:$0xf]
    %v1036 = vld [vmem:[#allocation6 + $0x4] sm:$0xf]
    %v1037 = vld [vmem:[#allocation6 + $0x8] sm:$0xf]
    %v1038 = vld [vmem:[#allocation6 + $0xc] sm:$0xf]
    %v1039 = vld [vmem:[#allocation6 + $0x10] sm:$0xf]
    %v1040 = vld [vmem:[#allocation6 + $0x14] sm:$0xf]
    %v1041 = vld [vmem:[#allocation6 + $0x18] sm:$0xf]
    %v1042 = vld [vmem:[#allocation6 + $0x1c] sm:$0xf]
    %v1043 = vld [vmem:[#allocation6 + $0x20] sm:$0xf]
    %v1044 = vld [vmem:[#allocation6 + $0x24] sm:$0xf]
    %v1045 = vld [vmem:[#allocation6 + $0x28] sm:$0xf]
    %v1046 = vld [vmem:[#allocation6 + $0x2c] sm:$0xf]
    %v1047 = vld [vmem:[#allocation6 + $0x30] sm:$0xf]
    %v1048 = vld [vmem:[#allocation6 + $0x34] sm:$0xf]
    %v1049 = vld [vmem:[#allocation6 + $0x38] sm:$0xf]
    %v1050 = vld [vmem:[#allocation6 + $0x3c] sm:$0xf]
    %v1051 = vld [vmem:[#allocation6 + $0x40] sm:$0xf]
    %v1052 = vld [vmem:[#allocation6 + $0x44] sm:$0xf]
    %v1053 = vld [vmem:[#allocation6 + $0x48] sm:$0xf]
    %v1054 = vld [vmem:[#allocation6 + $0x4c] sm:$0xf]
    %v1055 = vld [vmem:[#allocation6 + $0x50] sm:$0xf]
    %v1056 = vld [vmem:[#allocation6 + $0x54] sm:$0xf]
    %v1057 = vld [vmem:[#allocation6 + $0x58] sm:$0xf]
    %v1058 = vld [vmem:[#allocation6 + $0x5c] sm:$0xf]
    %v1059 = vld [vmem:[#allocation6 + $0x60] sm:$0xf]
    %v1060 = vld [vmem:[#allocation6 + $0x64] sm:$0xf]
    %v1061 = vld [vmem:[#allocation6 + $0x68] sm:$0xf]
    %v1062 = vld [vmem:[#allocation6 + $0x6c] sm:$0xf]
    %v1063 = vld [vmem:[#allocation6 + $0x70] sm:$0xf]
    %v1064 = vld [vmem:[#allocation6 + $0x74] sm:$0xf]
    %v1065 = vld [vmem:[#allocation6 + $0x78] sm:$0xf]
    %v1066 = vld [vmem:[#allocation6 + $0x7c] sm:$0xf]
    %v1067 = vld [vmem:[#allocation6 + $0x80] sm:$0xf]
    %v1068 = vld [vmem:[#allocation6 + $0x84] sm:$0xf]
    %v1069 = vld [vmem:[#allocation6 + $0x88] sm:$0xf]
    %v1070 = vld [vmem:[#allocation6 + $0x8c] sm:$0xf]
    %v1071 = vld [vmem:[#allocation6 + $0x90] sm:$0xf]
    %v1072 = vld [vmem:[#allocation6 + $0x94] sm:$0xf]
    %v1073 = vld [vmem:[#allocation6 + $0x98] sm:$0xf]
    %v1074 = vld [vmem:[#allocation6 + $0x9c] sm:$0xf]
    %v1075 = vld [vmem:[#allocation6 + $0xa0] sm:$0xf]
    %v1076 = vld [vmem:[#allocation6 + $0xa4] sm:$0xf]
    %v1077 = vld [vmem:[#allocation6 + $0xa8] sm:$0xf]
    %v1078 = vld [vmem:[#allocation6 + $0xac] sm:$0xf]
    %v1079 = vld [vmem:[#allocation6 + $0xb0] sm:$0xf]
    %v1080 = vld [vmem:[#allocation6 + $0xb4] sm:$0xf]
    %v1081 = vld [vmem:[#allocation6 + $0xb8] sm:$0xf]
    %v1082 = vld [vmem:[#allocation6 + $0xbc] sm:$0xf]
    %v1083 = vld [vmem:[#allocation6 + $0xc0] sm:$0xf]
    %v1084 = vld [vmem:[#allocation6 + $0xc4] sm:$0xf]
    %v1085 = vld [vmem:[#allocation6 + $0xc8] sm:$0xf]
    %v1086 = vld [vmem:[#allocation6 + $0xcc] sm:$0xf]
    %v1087 = vld [vmem:[#allocation6 + $0xd0] sm:$0xf]
    %v1088 = vld [vmem:[#allocation6 + $0xd4] sm:$0xf]
    %v1089 = vld [vmem:[#allocation6 + $0xd8] sm:$0xf]
    %v1090 = vld [vmem:[#allocation6 + $0xdc] sm:$0xf]
    %v1091 = vld [vmem:[#allocation6 + $0xe0] sm:$0xf]
    %v1092 = vld [vmem:[#allocation6 + $0xe4] sm:$0xf]
    %v1093 = vld [vmem:[#allocation6 + $0xe8] sm:$0xf]
    %v1094 = vld [vmem:[#allocation6 + $0xec] sm:$0xf]
    %v1095 = vld [vmem:[#allocation6 + $0xf0] sm:$0xf]
    %v1096 = vld [vmem:[#allocation6 + $0xf4] sm:$0xf]
    %v1097 = vld [vmem:[#allocation6 + $0xf8] sm:$0xf]
    %v1098 = vld [vmem:[#allocation6 + $0xfc] sm:$0xf]
    %v1099 = vld [vmem:[%s11] sm:$0x1]
    %v1101 = vlaneseq
    %v1102 = vshrl.u32 %v1101, 7
    %v1103 = vsub.s32 0, %v1102
    %v1104 = vrot.slane %v1099, %v1103
    %v1170 = vunpack.c.l.b16 %v1035
    %v1171 = vunpack.c.l.b16 %v1036
    %v1172 = vunpack.c.l.b16 %v1037
    %v1173 = vunpack.c.l.b16 %v1038
    %v1174 = vunpack.c.l.b16 %v1039
    %v1175 = vunpack.c.l.b16 %v1040
    %v1176 = vunpack.c.l.b16 %v1041
    %v1177 = vunpack.c.l.b16 %v1042
    %v1178 = vunpack.c.l.b16 %v1043
    %v1179 = vunpack.c.l.b16 %v1044
    %v1180 = vunpack.c.l.b16 %v1045
    %v1181 = vunpack.c.l.b16 %v1046
    %v1182 = vunpack.c.l.b16 %v1047
    %v1183 = vunpack.c.l.b16 %v1048
    %v1184 = vunpack.c.l.b16 %v1049
    %v1185 = vunpack.c.l.b16 %v1050
    %v1186 = vunpack.c.l.b16 %v1051
    %v1187 = vunpack.c.l.b16 %v1052
    %v1188 = vunpack.c.l.b16 %v1053
    %v1189 = vunpack.c.l.b16 %v1054
    %v1190 = vunpack.c.l.b16 %v1055
    %v1191 = vunpack.c.l.b16 %v1056
    %v1192 = vunpack.c.l.b16 %v1057
    %v1193 = vunpack.c.l.b16 %v1058
    %v1194 = vunpack.c.l.b16 %v1059
    %v1195 = vunpack.c.l.b16 %v1060
    %v1196 = vunpack.c.l.b16 %v1061
    %v1197 = vunpack.c.l.b16 %v1062
    %v1198 = vunpack.c.l.b16 %v1063
    %v1199 = vunpack.c.l.b16 %v1064
    %v1200 = vunpack.c.l.b16 %v1065
    %v1201 = vunpack.c.l.b16 %v1066
    %v1202 = vunpack.c.l.b16 %v1067
    %v1203 = vunpack.c.l.b16 %v1068
    %v1204 = vunpack.c.l.b16 %v1069
    %v1205 = vunpack.c.l.b16 %v1070
    %v1206 = vunpack.c.l.b16 %v1071
    %v1207 = vunpack.c.l.b16 %v1072
    %v1208 = vunpack.c.l.b16 %v1073
    %v1209 = vunpack.c.l.b16 %v1074
    %v1210 = vunpack.c.l.b16 %v1075
    %v1211 = vunpack.c.l.b16 %v1076
    %v1212 = vunpack.c.l.b16 %v1077
    %v1213 = vunpack.c.l.b16 %v1078
    %v1214 = vunpack.c.l.b16 %v1079
    %v1215 = vunpack.c.l.b16 %v1080
    %v1216 = vunpack.c.l.b16 %v1081
    %v1217 = vunpack.c.l.b16 %v1082
    %v1218 = vunpack.c.l.b16 %v1083
    %v1219 = vunpack.c.l.b16 %v1084
    %v1220 = vunpack.c.l.b16 %v1085
    %v1221 = vunpack.c.l.b16 %v1086
    %v1222 = vunpack.c.l.b16 %v1087
    %v1223 = vunpack.c.l.b16 %v1088
    %v1224 = vunpack.c.l.b16 %v1089
    %v1225 = vunpack.c.l.b16 %v1090
    %v1226 = vunpack.c.l.b16 %v1091
    %v1227 = vunpack.c.l.b16 %v1092
    %v1228 = vunpack.c.l.b16 %v1093
    %v1229 = vunpack.c.l.b16 %v1094
    %v1230 = vunpack.c.l.b16 %v1095
    %v1231 = vunpack.c.l.b16 %v1096
    %v1232 = vunpack.c.l.b16 %v1097
    %v1233 = vunpack.c.l.b16 %v1098
    %v1234 = vpack.c.b16 %v1171, %v1170
    %v1235 = vpack.c.b16 %v1173, %v1172
    %v1236 = vpack.c.b16 %v1175, %v1174
    %v1237 = vpack.c.b16 %v1177, %v1176
    %v1238 = vpack.c.b16 %v1179, %v1178
    %v1239 = vpack.c.b16 %v1181, %v1180
    %v1240 = vpack.c.b16 %v1183, %v1182
    %v1241 = vpack.c.b16 %v1185, %v1184
    %v1242 = vpack.c.b16 %v1187, %v1186
    %v1243 = vpack.c.b16 %v1189, %v1188
    %v1244 = vpack.c.b16 %v1191, %v1190
    %v1245 = vpack.c.b16 %v1193, %v1192
    %v1246 = vpack.c.b16 %v1195, %v1194
    %v1247 = vpack.c.b16 %v1197, %v1196
    %v1248 = vpack.c.b16 %v1199, %v1198
    %v1249 = vpack.c.b16 %v1201, %v1200
    %v1250 = vpack.c.b16 %v1203, %v1202
    %v1251 = vpack.c.b16 %v1205, %v1204
    %v1252 = vpack.c.b16 %v1207, %v1206
    %v1253 = vpack.c.b16 %v1209, %v1208
    %v1254 = vpack.c.b16 %v1211, %v1210
    %v1255 = vpack.c.b16 %v1213, %v1212
    %v1256 = vpack.c.b16 %v1215, %v1214
    %v1257 = vpack.c.b16 %v1217, %v1216
    %v1258 = vpack.c.b16 %v1219, %v1218
    %v1259 = vpack.c.b16 %v1221, %v1220
    %v1260 = vpack.c.b16 %v1223, %v1222
    %v1261 = vpack.c.b16 %v1225, %v1224
    %v1262 = vpack.c.b16 %v1227, %v1226
    %v1263 = vpack.c.b16 %v1229, %v1228
    %v1264 = vpack.c.b16 %v1231, %v1230
    %v1265 = vpack.c.b16 %v1233, %v1232
    %1298 = vmatprep.subr.bf16.mxu0 0
    %1299 = vmatpush1.bf16.msra.mxu0 %v1234
    %1300 = vmatprep.subr.bf16.mxu0 0
    %1301 = vmatpush1.bf16.msra.mxu0 %v1235
    %1302 = vmatprep.subr.bf16.mxu0 0
    %1303 = vmatpush1.bf16.msra.mxu0 %v1236
    %1304 = vmatprep.subr.bf16.mxu0 0
    %1305 = vmatpush1.bf16.msra.mxu0 %v1237
    %1306 = vmatprep.subr.bf16.mxu0 0
    %1307 = vmatpush1.bf16.msra.mxu0 %v1238
    %1308 = vmatprep.subr.bf16.mxu0 0
    %1309 = vmatpush1.bf16.msra.mxu0 %v1239
    %1310 = vmatprep.subr.bf16.mxu0 0
    %1311 = vmatpush1.bf16.msra.mxu0 %v1240
    %1312 = vmatprep.subr.bf16.mxu0 0
    %1313 = vmatpush1.bf16.msra.mxu0 %v1241
    %1314 = vmatprep.subr.bf16.mxu0 0
    %1315 = vmatpush1.bf16.msra.mxu0 %v1242
    %1316 = vmatprep.subr.bf16.mxu0 0
    %1317 = vmatpush1.bf16.msra.mxu0 %v1243
    %1318 = vmatprep.subr.bf16.mxu0 0
    %1319 = vmatpush1.bf16.msra.mxu0 %v1244
    %1320 = vmatprep.subr.bf16.mxu0 0
    %1321 = vmatpush1.bf16.msra.mxu0 %v1245
    %1322 = vmatprep.subr.bf16.mxu0 0
    %1323 = vmatpush1.bf16.msra.mxu0 %v1246
    %1324 = vmatprep.subr.bf16.mxu0 0
    %1325 = vmatpush1.bf16.msra.mxu0 %v1247
    %1326 = vmatprep.subr.bf16.mxu0 0
    %1327 = vmatpush1.bf16.msra.mxu0 %v1248
    %1328 = vmatprep.subr.bf16.mxu0 0
    %1329 = vmatpush1.bf16.msra.mxu0 %v1249
    %1330 = vmatprep.mubr.bf16.mxu0 %v1032
    %1331 = vmatmul.mubr.bf16.gmra.mrb[0].mxu0 %v1031
    %v1332 = vpop.f32.mrb[0].mxu0
    %v1333 = vadd.f32 %v1104, %v1332
    %v1334 = vpop.f32.mrb[0].mxu0
    %v1335 = vpop.f32.mrb[0].mxu0
    %v1336 = vpop.f32.mrb[0].mxu0
    %1337 = vdwg.mxu0
    %1338 = vmatprep.subr.bf16.mxu0 0
    %1339 = vmatpush1.bf16.msra.mxu0 %v1250
    %1340 = vmatprep.subr.bf16.mxu0 0
    %1341 = vmatpush1.bf16.msra.mxu0 %v1251
    %1342 = vmatprep.subr.bf16.mxu0 0
    %1343 = vmatpush1.bf16.msra.mxu0 %v1252
    %1344 = vmatprep.subr.bf16.mxu0 0
    %1345 = vmatpush1.bf16.msra.mxu0 %v1253
    %1346 = vmatprep.subr.bf16.mxu0 0
    %1347 = vmatpush1.bf16.msra.mxu0 %v1254
    %1348 = vmatprep.subr.bf16.mxu0 0
    %1349 = vmatpush1.bf16.msra.mxu0 %v1255
    %1350 = vmatprep.subr.bf16.mxu0 0
    %1351 = vmatpush1.bf16.msra.mxu0 %v1256
    %1352 = vmatprep.subr.bf16.mxu0 0
    %1353 = vmatpush1.bf16.msra.mxu0 %v1257
    %1354 = vmatprep.subr.bf16.mxu0 0
    %1355 = vmatpush1.bf16.msra.mxu0 %v1258
    %1356 = vmatprep.subr.bf16.mxu0 0
    %1357 = vmatpush1.bf16.msra.mxu0 %v1259
    %1358 = vmatprep.subr.bf16.mxu0 0
    %1359 = vmatpush1.bf16.msra.mxu0 %v1260
    %1360 = vmatprep.subr.bf16.mxu0 0
    %1361 = vmatpush1.bf16.msra.mxu0 %v1261
    %1362 = vmatprep.subr.bf16.mxu0 0
    %1363 = vmatpush1.bf16.msra.mxu0 %v1262
    %1364 = vmatprep.subr.bf16.mxu0 0
    %1365 = vmatpush1.bf16.msra.mxu0 %v1263
    %1366 = vmatprep.subr.bf16.mxu0 0
    %1367 = vmatpush1.bf16.msra.mxu0 %v1264
    %1368 = vmatprep.subr.bf16.mxu0 0
    %1369 = vmatpush1.bf16.msra.mxu0 %v1265
    %1370 = vmatprep.mubr.bf16.mxu0 %v1034
    %1371 = vmatmul.mubr.bf16.gmra.mrb[0].mxu0 %v1033
    %v1372 = vpop.f32.mrb[0].mxu0
    %v1373 = vadd.f32 %v1333, %v1372
    %v1374 = vpop.f32.mrb[0].mxu0
    %v1375 = vpop.f32.mrb[0].mxu0
    %v1376 = vpop.f32.mrb[0].mxu0
    %1377 = vdwg.mxu0
    %v1378 = vtanh.pop %v1373
    %1379 = vst [vmem:[%s12] sm:$0xff] %v1378
    // Predicated region
    $region62: #{generator_forward.1} parent=1 // pred_check
      _
    $region63: #{generator_forward.1} parent=1 // pred_check_branch
      %1381 = sbr.rel (0) target = $region65
    $region64: #{generator_forward.1} parent=1 // pred_region
      _
    $region65: #{generator_forward.1} parent=1 // pred_fallthru
      _
    // Predicated region
    $region66: #{generator_forward.1} parent=1 // pred_check
      _
    $region67: #{generator_forward.1} parent=1 // pred_check_branch
      %1383 = sbr.rel (0) target = $region69
    $region68: #{generator_forward.1} parent=1 // pred_region
      _
    $region69: #{generator_forward.1} parent=1 // pred_fallthru
      _
    %1384 = vsyncpa [#allocation3], 1
    %1385 = vsyncpa [#allocation5], 1

</llo_original>
